<compile_context>
chip_gen: v5e
topology: v5e:2x2
jax: 0.10.0
libtpu: 0.0.40
codegen_flags: <defaults>
</compile_context>

<pallas_src>
import functools

import jax
import jax.numpy as jnp
from jax.experimental import pallas as pl
from jax.experimental.pallas import tpu as pltpu

LANE = 128   # lane width: node + feature dims are padded to multiples of this


def _round_up(x, m):
    return (x + m - 1) // m * m


def _vmem_capacity_bytes():
    try:
        return int(pltpu.get_tpu_info().vmem_capacity_bytes)
    except Exception:
        return 64 << 20        # conservative default (v7x per-TC VMEM)


# --------------------------------------------------------------------------
# VMEM footprint estimates (drive fused-vs-tiled dispatch and vmem_limit)
# --------------------------------------------------------------------------
def _fused_vmem_footprint(n_pad, f0_pad, layer_cfg, f_last_pad, max_scr_f):
    b = 2 * n_pad * n_pad                 # adjacency, bf16, single-buffered
    b += 4 * n_pad                        # inv_deg f32
    b += 2 * n_pad * f0_pad               # x bf16
    for fp_in, fp_out, _ in layer_cfg:
        b += 2 * 2 * fp_in * fp_out + 4 * fp_out      # W_l, W_r, bias
    b += 2 * (2 * n_pad * max_scr_f)      # two ping-pong h scratch (bf16)
    b += 4 * n_pad * f_last_pad           # f32 output
    max_f = max(max(fp_in, fp_out) for fp_in, fp_out, _ in layer_cfg)
    b += 2 * 4 * n_pad * max_f            # transient f32 agg/out per layer
    return b


def _tiled_vmem_footprint(tm, n_pad, fk, fp_in, fp_out, pre_transformed):
    b = 2 * (tm * n_pad * 2)              # A row tile, bf16, double-buffered
    b += 2 * (tm * 4)                     # inv_deg tile
    b += 2 * (n_pad * fk * 2)             # resident hk (2 bufs by default)
    b += 2 * (tm * fp_in * 2)             # root-feature row tile
    if not pre_transformed:
        b += 2 * (fp_in * fp_out * 2)     # W_l
    b += 2 * (fp_in * fp_out * 2)         # W_r
    b += 2 * (fp_out * 4)                 # bias
    b += 2 * (tm * fp_out * 4)            # output tile
    b += 3 * (tm * fp_out * 4)            # in-kernel f32 temporaries
    return b


# --------------------------------------------------------------------------
# FUSED kernel: all SAGEConv layers in one call, adjacency VMEM-resident.
#   layer_cfg: tuple of (fp_in, fp_out, agg_first) per layer (static).
#   refs: (w_l, w_r, b) * L, out, h_scratch0, h_scratch1
# --------------------------------------------------------------------------
def _fused_sage_kernel(a_ref, inv_ref, x_ref, *refs, layer_cfg):
    num_layers = len(layer_cfg)
    wb = refs[:3 * num_layers]
    o_ref = refs[3 * num_layers]
    h_scr = refs[3 * num_layers + 1:]     # two ping-pong VMEM buffers (bf16)

    a = a_ref[...]                        # (N, N) bf16 0/1 adjacency
    inv_deg = inv_ref[...]                # (N, 1) f32 exact 1/deg

    for l, (fp_in, fp_out, agg_first) in enumerate(layer_cfg):
        w_l = wb[3 * l][...]              # (fp_in, fp_out) bf16
        w_r = wb[3 * l + 1][...]          # (fp_in, fp_out) bf16
        b = wb[3 * l + 2][...]            # (1, fp_out)     f32

        h = x_ref[...] if l == 0 else h_scr[(l - 1) % 2][:, :fp_in]

        if agg_first:
            # agg = (1/deg) * (A @ h);  out = agg @ W_l + h @ W_r + b
            agg = inv_deg * jnp.dot(a, h, preferred_element_type=jnp.float32)
            out = jnp.dot(agg.astype(jnp.bfloat16), w_l,
                          preferred_element_type=jnp.float32)
        else:
            # y_l = h @ W_l;  out = (1/deg) * (A @ y_l) + h @ W_r + b
            y_l = jnp.dot(h, w_l, preferred_element_type=jnp.float32
                          ).astype(jnp.bfloat16)
            out = inv_deg * jnp.dot(a, y_l, preferred_element_type=jnp.float32)
        out = out + jnp.dot(h, w_r, preferred_element_type=jnp.float32) + b

        if l != num_layers - 1:
            out = jnp.maximum(out, 0.0)                  # ReLU
            # dropout: eval mode -> identity
            h_scr[l % 2][:, :fp_out] = out.astype(jnp.bfloat16)
        else:
            o_ref[...] = out.astype(o_ref.dtype)


def _fused_sage_forward(a_p, inv_p, x_p, wbs, layer_cfg, f_last_pad,
                        max_scr_f, footprint, vmem_cap):
    n_pad = a_p.shape[0]
    inputs = [a_p, inv_p, x_p]
    for wl_p, wr_p, b_p in wbs:
        inputs += [wl_p, wr_p, b_p]

    flops = 0
    for fp_in, fp_out, agg_first in layer_cfg:
        flops += 2 * n_pad * n_pad * (fp_in if agg_first else fp_out)
        flops += 2 * 2 * n_pad * fp_in * fp_out
    bytes_accessed = (sum(int(v.size) * v.dtype.itemsize for v in inputs)
                      + n_pad * f_last_pad * 4)

    kernel = functools.partial(_fused_sage_kernel, layer_cfg=tuple(layer_cfg))
    vmem_spec = pl.BlockSpec(memory_space=pltpu.MemorySpace.VMEM)
    return pl.pallas_call(
        kernel,
        out_shape=jax.ShapeDtypeStruct((n_pad, f_last_pad), jnp.float32),
        in_specs=[vmem_spec] * len(inputs),
        out_specs=vmem_spec,
        scratch_shapes=[pltpu.VMEM((n_pad, max_scr_f), jnp.bfloat16),
                        pltpu.VMEM((n_pad, max_scr_f), jnp.bfloat16)],
        compiler_params=pltpu.CompilerParams(
            vmem_limit_bytes=int(min(vmem_cap, max(2 * footprint, 32 << 20)))),
        cost_estimate=pl.CostEstimate(flops=int(flops), transcendentals=0,
                                      bytes_accessed=int(bytes_accessed)),
    )(*inputs)


# --------------------------------------------------------------------------
# TILED fallback: one SAGEConv layer, destination-node rows of A tiled,
# 'parallel' row grid (uses both TensorCores on v7x), A pipelined from HBM.
# --------------------------------------------------------------------------
def _tiled_layer_kernel(a_ref, inv_ref, hk_ref, hroot_ref, *rest,
                        pre_transformed, apply_relu):
    if pre_transformed:
        w_r_ref, b_ref, o_ref = rest
    else:
        w_l_ref, w_r_ref, b_ref, o_ref = rest

    msg = inv_ref[...] * jnp.dot(a_ref[...], hk_ref[...],
                                 preferred_element_type=jnp.float32)
    if not pre_transformed:
        msg = jnp.dot(msg.astype(jnp.bfloat16), w_l_ref[...],
                      preferred_element_type=jnp.float32)
    out = (msg
           + jnp.dot(hroot_ref[...], w_r_ref[...],
                     preferred_element_type=jnp.float32)
           + b_ref[...])
    if apply_relu:
        out = jnp.maximum(out, 0.0)       # ReLU (dropout: eval -> identity)
    o_ref[...] = out.astype(o_ref.dtype)


def _tiled_sage_layer(a_p, inv_p, h, w_l, w_r, b, *, apply_relu, vmem_cap):
    n_pad = a_p.shape[0]
    fp_in = h.shape[1]
    fp_out = w_l.shape[1]
    pre_transformed = fp_out < fp_in      # keep the N^2 matmul on min(F) width
    if pre_transformed:
        hk = jnp.dot(h, w_l, preferred_element_type=jnp.float32
                     ).astype(jnp.bfloat16)
    else:
        hk = h
    fk = hk.shape[1]

    # largest row tile that divides n_pad and keeps the call inside VMEM
    tm = 128
    for cand in (512, 256, 128):
        if n_pad % cand == 0 and _tiled_vmem_footprint(
                cand, n_pad, fk, fp_in, fp_out,
                pre_transformed) < 0.7 * vmem_cap:
            tm = cand
            break
    footprint = _tiled_vmem_footprint(tm, n_pad, fk, fp_in, fp_out,
                                      pre_transformed)

    inputs = [a_p, inv_p, hk, h]
    in_specs = [
        pl.BlockSpec((tm, n_pad), lambda i: (i, 0)),     # A row tile
        pl.BlockSpec((tm, 1), lambda i: (i, 0)),         # inv_deg rows
        pl.BlockSpec((n_pad, fk), lambda i: (0, 0)),     # hk resident
        pl.BlockSpec((tm, fp_in), lambda i: (i, 0)),     # root-feature rows
    ]
    if not pre_transformed:
        inputs.append(w_l)
        in_specs.append(pl.BlockSpec((fp_in, fp_out), lambda i: (0, 0)))
    inputs += [w_r, b]
    in_specs += [pl.BlockSpec((fp_in, fp_out), lambda i: (0, 0)),
                 pl.BlockSpec((1, fp_out), lambda i: (0, 0))]

    flops = 2 * n_pad * n_pad * fk + 2 * n_pad * fp_in * fp_out
    if not pre_transformed:
        flops += 2 * n_pad * fp_in * fp_out
    out_dtype = jnp.bfloat16 if apply_relu else jnp.float32
    bytes_accessed = (sum(int(v.size) * v.dtype.itemsize for v in inputs)
                      + n_pad * fp_out * (2 if apply_relu else 4))

    kernel = functools.partial(_tiled_layer_kernel,
                               pre_transformed=pre_transformed,
                               apply_relu=apply_relu)
    return pl.pallas_call(
        kernel,
        out_shape=jax.ShapeDtypeStruct((n_pad, fp_out), out_dtype),
        grid=(n_pad // tm,),
        in_specs=in_specs,
        out_specs=pl.BlockSpec((tm, fp_out), lambda i: (i, 0)),
        compiler_params=pltpu.CompilerParams(
            dimension_semantics=("parallel",),
            vmem_limit_bytes=int(min(vmem_cap, max(2 * footprint, 32 << 20)))),
        cost_estimate=pl.CostEstimate(flops=int(flops), transcendentals=0,
                                      bytes_accessed=int(bytes_accessed)),
    )(*inputs)


# --------------------------------------------------------------------------
# Glue: edge_index -> undirected 0/1 adjacency (bf16, padded) + f32 1/deg
# --------------------------------------------------------------------------
def build_adjacency(edge_index, num_nodes, n_pad=None):
    n_pad = num_nodes if n_pad is None else n_pad
    src, dst = edge_index[0], edge_index[1]
    adj = jnp.zeros((n_pad, n_pad), jnp.bfloat16)      # built directly in bf16
    adj = adj.at[dst, src].set(1.0)                    # message src -> dst
    adj = adj.at[src, dst].set(1.0)                    # to_undirected (dedup)
    deg = jnp.sum(adj, axis=1, keepdims=True, dtype=jnp.float32)
    inv_deg = 1.0 / jnp.maximum(deg, 1.0)              # mean; isolated -> 1
    return adj, inv_deg


# --------------------------------------------------------------------------
# SAGE model: params init + forward (fused for small graphs, tiled fallback)
# --------------------------------------------------------------------------
def xavier_uniform(key, fan_in, fan_out):
    bound = jnp.sqrt(6.0 / (fan_in + fan_out))
    return jax.random.uniform(key, (fan_in, fan_out), jnp.float32, -bound, bound)


def init_sage_params(key, num_layers, in_channels, hidden_channels,
                     out_channels):
    """Mirrors SAGE.__init__ layer-size bookkeeping; xavier weights, zero bias."""
    params = []
    ic, hc = in_channels, hidden_channels
    for i in range(num_layers):
        ic = in_channels if i == 0 else hc
        hc = out_channels if i == num_layers - 1 else hidden_channels
        key, k1, k2 = jax.random.split(key, 3)
        w_l = xavier_uniform(k1, ic, hc)          # lin_l.weight.T
        w_r = xavier_uniform(k2, ic, hc)          # lin_r.weight.T (no bias)
        b_l = jnp.zeros((hc,), jnp.float32)       # lin_l.bias
        params.append((w_l, w_r, b_l))
    return params


def sage_forward(x, edge_index, params, *, adj_cache=None, force_tiled=False):
    n, f0 = x.shape
    n_pad = _round_up(n, LANE)   # 128-aligned: lane-dense A rows, full bf16 tiles

    if adj_cache is None:
        a_p, inv_p = build_adjacency(edge_index, n, n_pad)
    else:
        a_p, inv_p = adj_cache
    # TODO(synk): cache (a_p, inv_p) across forward calls when the graph is static.

    f0_pad = _round_up(f0, LANE)
    x_p = jnp.zeros((n_pad, f0_pad), jnp.bfloat16).at[:n, :f0].set(
        x.astype(jnp.bfloat16))

    wbs, layer_cfg = [], []
    f_in = f0
    for (w_l, w_r, b) in params:
        f_out = w_l.shape[1]
        fp_in, fp_out = _round_up(f_in, LANE), _round_up(f_out, LANE)
        wl_p = jnp.zeros((fp_in, fp_out), jnp.bfloat16).at[:f_in, :f_out].set(
            w_l.astype(jnp.bfloat16))
        wr_p = jnp.zeros((fp_in, fp_out), jnp.bfloat16).at[:f_in, :f_out].set(
            w_r.astype(jnp.bfloat16))
        b_p = jnp.zeros((1, fp_out), jnp.float32).at[0, :f_out].set(b)
        wbs.append((wl_p, wr_p, b_p))
        # run the N^2 matmul over the narrower (padded) feature width
        layer_cfg.append((fp_in, fp_out, fp_in <= fp_out))
        f_in = f_out
    f_last = params[-1][0].shape[1]
    f_last_pad = layer_cfg[-1][1]

    vmem_cap = _vmem_capacity_bytes()
    max_scr_f = max([128] + [cfg[1] for cfg in layer_cfg[:-1]])
    fused_bytes = _fused_vmem_footprint(n_pad, f0_pad, layer_cfg, f_last_pad,
                                        max_scr_f)
    use_fused = (not force_tiled) and fused_bytes < 0.7 * vmem_cap

    if use_fused:
        out_p = _fused_sage_forward(a_p, inv_p, x_p, wbs, layer_cfg,
                                    f_last_pad, max_scr_f, fused_bytes,
                                    vmem_cap)
    else:
        h = x_p
        num_layers = len(wbs)
        for l, (wl_p, wr_p, b_p) in enumerate(wbs):
            h = _tiled_sage_layer(a_p, inv_p, h, wl_p, wr_p, b_p,
                                  apply_relu=(l != num_layers - 1),
                                  vmem_cap=vmem_cap)
        out_p = h

    return out_p[:n, :f_last].astype(jnp.float32)


# --------------------------------------------------------------------------
# Pure-JAX f32 reference (for correctness check)
# --------------------------------------------------------------------------
def sage_reference(x, edge_index, params):
    n = x.shape[0]
    src, dst = edge_index[0], edge_index[1]
    adj = (jnp.zeros((n, n), jnp.float32)
           .at[dst, src].set(1.0).at[src, dst].set(1.0))
    deg = jnp.sum(adj, axis=1, keepdims=True)
    a_norm = adj / jnp.maximum(deg, 1.0)
    h = x
    num_layers = len(params)
    for i, (w_l, w_r, b) in enumerate(params):
        out = (a_norm @ h) @ w_l + h @ w_r + b.reshape(1, -1)
        if i != num_layers - 1:
            out = jnp.maximum(out, 0.0)
        h = out
    return h


# --------------------------------------------------------------------------
if __name__ == "__main__":
    key = jax.random.PRNGKey(0)

    # small shapes consistent with the module (exercise both layer branches)
    num_nodes = 20
    in_channels, hidden_channels, out_channels = 12, 160, 16
    num_layers = 3
    num_edges = 48

    kx, ke, kp = jax.random.split(key, 3)
    x = jax.random.normal(kx, (num_nodes, in_channels), jnp.float32)
    edge_index = jax.random.randint(ke, (2, num_edges), 0, num_nodes, jnp.int32)

    params = init_sage_params(kp, num_layers, in_channels, hidden_channels,
                              out_channels)

    ref = sage_reference(x, edge_index, params)

    # fused (VMEM-resident adjacency) path
    out_fused = jax.block_until_ready(sage_forward(x, edge_index, params))
    assert out_fused.shape == (num_nodes, out_channels)
    assert jnp.all(jnp.isfinite(out_fused))
    assert jnp.allclose(out_fused, ref, rtol=5e-2, atol=5e-2), (
        f"fused max abs err {jnp.max(jnp.abs(out_fused - ref))}")

    # row-tiled per-layer fallback path (large-graph / v7x regime)
    out_tiled = jax.block_until_ready(
        sage_forward(x, edge_index, params, force_tiled=True))
    assert out_tiled.shape == (num_nodes, out_channels)
    assert jnp.all(jnp.isfinite(out_tiled))
    assert jnp.allclose(out_tiled, ref, rtol=5e-2, atol=5e-2), (
        f"tiled max abs err {jnp.max(jnp.abs(out_tiled - ref))}")

    print("KERNEL_OK")
</pallas_src>

<mosaic_0001>
module attributes {stable_mosaic.version = 11 : i64} {
  func.func @_fused_sage_kernel(%arg0: memref<128x128xbf16, #tpu.memory_space<vmem>>, %arg1: memref<128x1xf32, #tpu.memory_space<vmem>>, %arg2: memref<128x128xbf16, #tpu.memory_space<vmem>>, %arg3: memref<128x256xbf16, #tpu.memory_space<vmem>>, %arg4: memref<128x256xbf16, #tpu.memory_space<vmem>>, %arg5: memref<1x256xf32, #tpu.memory_space<vmem>>, %arg6: memref<256x256xbf16, #tpu.memory_space<vmem>>, %arg7: memref<256x256xbf16, #tpu.memory_space<vmem>>, %arg8: memref<1x256xf32, #tpu.memory_space<vmem>>, %arg9: memref<256x128xbf16, #tpu.memory_space<vmem>>, %arg10: memref<256x128xbf16, #tpu.memory_space<vmem>>, %arg11: memref<1x128xf32, #tpu.memory_space<vmem>>, %arg12: memref<128x128xf32, #tpu.memory_space<vmem>>, %arg13: memref<128x256xbf16, #tpu.memory_space<vmem>>, %arg14: memref<128x256xbf16, #tpu.memory_space<vmem>>) attributes {dimension_semantics = [], scalar_prefetch = 0 : i64, scratch_operands = 2 : i64, tpu.core_type = #tpu.core_type<tc>} {
    %c0 = arith.constant 0 : index
    %c0_0 = arith.constant 0 : index
    %0 = vector.load %arg0[%c0, %c0_0] : memref<128x128xbf16, #tpu.memory_space<vmem>>, vector<128x128xbf16>
    %c0_1 = arith.constant 0 : index
    %c0_2 = arith.constant 0 : index
    %1 = vector.load %arg1[%c0_1, %c0_2] : memref<128x1xf32, #tpu.memory_space<vmem>>, vector<128x1xf32>
    %c0_3 = arith.constant 0 : index
    %c0_4 = arith.constant 0 : index
    %2 = vector.load %arg3[%c0_3, %c0_4] : memref<128x256xbf16, #tpu.memory_space<vmem>>, vector<128x256xbf16>
    %c0_5 = arith.constant 0 : index
    %c0_6 = arith.constant 0 : index
    %3 = vector.load %arg4[%c0_5, %c0_6] : memref<128x256xbf16, #tpu.memory_space<vmem>>, vector<128x256xbf16>
    %c0_7 = arith.constant 0 : index
    %c0_8 = arith.constant 0 : index
    %4 = vector.load %arg5[%c0_7, %c0_8] : memref<1x256xf32, #tpu.memory_space<vmem>>, vector<1x256xf32>
    %c0_9 = arith.constant 0 : index
    %c0_10 = arith.constant 0 : index
    %5 = vector.load %arg2[%c0_9, %c0_10] : memref<128x128xbf16, #tpu.memory_space<vmem>>, vector<128x128xbf16>
    %cst = arith.constant dense<0.000000e+00> : vector<128x128xf32>
    %6 = tpu.matmul %0, %5, %cst {dimension_numbers = #tpu.dot_dimension_numbers<[1], [0], [0], [1], [0, 0, 1, 1], [], []>} : vector<128x128xbf16>, vector<128x128xbf16>, vector<128x128xf32> -> vector<128x128xf32>
    %7 = vector.broadcast %1 : vector<128x1xf32> to vector<128x128xf32>
    %8 = arith.mulf %7, %6 : vector<128x128xf32>
    %9 = arith.truncf %8 : vector<128x128xf32> to vector<128x128xbf16>
    %cst_11 = arith.constant dense<0.000000e+00> : vector<128x256xf32>
    %10 = tpu.matmul %9, %2, %cst_11 {dimension_numbers = #tpu.dot_dimension_numbers<[1], [0], [0], [1], [0, 0, 1, 1], [], []>} : vector<128x128xbf16>, vector<128x256xbf16>, vector<128x256xf32> -> vector<128x256xf32>
    %cst_12 = arith.constant dense<0.000000e+00> : vector<128x256xf32>
    %11 = tpu.matmul %5, %3, %cst_12 {dimension_numbers = #tpu.dot_dimension_numbers<[1], [0], [0], [1], [0, 0, 1, 1], [], []>} : vector<128x128xbf16>, vector<128x256xbf16>, vector<128x256xf32> -> vector<128x256xf32>
    %12 = arith.addf %10, %11 : vector<128x256xf32>
    %13 = vector.broadcast %4 : vector<1x256xf32> to vector<128x256xf32>
    %14 = arith.addf %12, %13 : vector<128x256xf32>
    %cst_13 = arith.constant 0.000000e+00 : f32
    %15 = vector.broadcast %cst_13 : f32 to vector<128x256xf32>
    %16 = arith.maximumf %14, %15 : vector<128x256xf32>
    %17 = arith.truncf %16 : vector<128x256xf32> to vector<128x256xbf16>
    %c0_14 = arith.constant 0 : index
    %c0_15 = arith.constant 0 : index
    %18 = vector.load %arg13[%c0_14, %c0_15] : memref<128x256xbf16, #tpu.memory_space<vmem>>, vector<128x256xbf16>
    tpu.vector_store %arg13[%c0_14, %c0_15], %17 {strides = array<i32>} : memref<128x256xbf16, #tpu.memory_space<vmem>>, vector<128x256xbf16>,
    %c0_16 = arith.constant 0 : index
    %c0_17 = arith.constant 0 : index
    %19 = vector.load %arg6[%c0_16, %c0_17] : memref<256x256xbf16, #tpu.memory_space<vmem>>, vector<256x256xbf16>
    %c0_18 = arith.constant 0 : index
    %c0_19 = arith.constant 0 : index
    %20 = vector.load %arg7[%c0_18, %c0_19] : memref<256x256xbf16, #tpu.memory_space<vmem>>, vector<256x256xbf16>
    %c0_20 = arith.constant 0 : index
    %c0_21 = arith.constant 0 : index
    %21 = vector.load %arg8[%c0_20, %c0_21] : memref<1x256xf32, #tpu.memory_space<vmem>>, vector<1x256xf32>
    %c0_22 = arith.constant 0 : index
    %c0_23 = arith.constant 0 : index
    %22 = vector.load %arg13[%c0_22, %c0_23] : memref<128x256xbf16, #tpu.memory_space<vmem>>, vector<128x256xbf16>
    %cst_24 = arith.constant dense<0.000000e+00> : vector<128x256xf32>
    %23 = tpu.matmul %0, %22, %cst_24 {dimension_numbers = #tpu.dot_dimension_numbers<[1], [0], [0], [1], [0, 0, 1, 1], [], []>} : vector<128x128xbf16>, vector<128x256xbf16>, vector<128x256xf32> -> vector<128x256xf32>
    %24 = vector.broadcast %1 : vector<128x1xf32> to vector<128x256xf32>
    %25 = arith.mulf %24, %23 : vector<128x256xf32>
    %26 = arith.truncf %25 : vector<128x256xf32> to vector<128x256xbf16>
    %cst_25 = arith.constant dense<0.000000e+00> : vector<128x256xf32>
    %27 = tpu.matmul %26, %19, %cst_25 {dimension_numbers = #tpu.dot_dimension_numbers<[1], [0], [0], [1], [0, 0, 1, 1], [], []>} : vector<128x256xbf16>, vector<256x256xbf16>, vector<128x256xf32> -> vector<128x256xf32>
    %cst_26 = arith.constant dense<0.000000e+00> : vector<128x256xf32>
    %28 = tpu.matmul %22, %20, %cst_26 {dimension_numbers = #tpu.dot_dimension_numbers<[1], [0], [0], [1], [0, 0, 1, 1], [], []>} : vector<128x256xbf16>, vector<256x256xbf16>, vector<128x256xf32> -> vector<128x256xf32>
    %29 = arith.addf %27, %28 : vector<128x256xf32>
    %30 = vector.broadcast %21 : vector<1x256xf32> to vector<128x256xf32>
    %31 = arith.addf %29, %30 : vector<128x256xf32>
    %cst_27 = arith.constant 0.000000e+00 : f32
    %32 = vector.broadcast %cst_27 : f32 to vector<128x256xf32>
    %33 = arith.maximumf %31, %32 : vector<128x256xf32>
    %34 = arith.truncf %33 : vector<128x256xf32> to vector<128x256xbf16>
    %c0_28 = arith.constant 0 : index
    %c0_29 = arith.constant 0 : index
    %35 = vector.load %arg14[%c0_28, %c0_29] : memref<128x256xbf16, #tpu.memory_space<vmem>>, vector<128x256xbf16>
    tpu.vector_store %arg14[%c0_28, %c0_29], %34 {strides = array<i32>} : memref<128x256xbf16, #tpu.memory_space<vmem>>, vector<128x256xbf16>,
    %c0_30 = arith.constant 0 : index
    %c0_31 = arith.constant 0 : index
    %36 = vector.load %arg9[%c0_30, %c0_31] : memref<256x128xbf16, #tpu.memory_space<vmem>>, vector<256x128xbf16>
    %c0_32 = arith.constant 0 : index
    %c0_33 = arith.constant 0 : index
    %37 = vector.load %arg10[%c0_32, %c0_33] : memref<256x128xbf16, #tpu.memory_space<vmem>>, vector<256x128xbf16>
    %c0_34 = arith.constant 0 : index
    %c0_35 = arith.constant 0 : index
    %38 = vector.load %arg11[%c0_34, %c0_35] : memref<1x128xf32, #tpu.memory_space<vmem>>, vector<1x128xf32>
    %c0_36 = arith.constant 0 : index
    %c0_37 = arith.constant 0 : index
    %39 = vector.load %arg14[%c0_36, %c0_37] : memref<128x256xbf16, #tpu.memory_space<vmem>>, vector<128x256xbf16>
    %cst_38 = arith.constant dense<0.000000e+00> : vector<128x128xf32>
    %40 = tpu.matmul %39, %36, %cst_38 {dimension_numbers = #tpu.dot_dimension_numbers<[1], [0], [0], [1], [0, 0, 1, 1], [], []>} : vector<128x256xbf16>, vector<256x128xbf16>, vector<128x128xf32> -> vector<128x128xf32>
    %41 = arith.truncf %40 : vector<128x128xf32> to vector<128x128xbf16>
    %cst_39 = arith.constant dense<0.000000e+00> : vector<128x128xf32>
    %42 = tpu.matmul %0, %41, %cst_39 {dimension_numbers = #tpu.dot_dimension_numbers<[1], [0], [0], [1], [0, 0, 1, 1], [], []>} : vector<128x128xbf16>, vector<128x128xbf16>, vector<128x128xf32> -> vector<128x128xf32>
    %43 = vector.broadcast %1 : vector<128x1xf32> to vector<128x128xf32>
    %44 = arith.mulf %43, %42 : vector<128x128xf32>
    %cst_40 = arith.constant dense<0.000000e+00> : vector<128x128xf32>
    %45 = tpu.matmul %39, %37, %cst_40 {dimension_numbers = #tpu.dot_dimension_numbers<[1], [0], [0], [1], [0, 0, 1, 1], [], []>} : vector<128x256xbf16>, vector<256x128xbf16>, vector<128x128xf32> -> vector<128x128xf32>
    %46 = arith.addf %44, %45 : vector<128x128xf32>
    %47 = vector.broadcast %38 : vector<1x128xf32> to vector<128x128xf32>
    %48 = arith.addf %46, %47 : vector<128x128xf32>
    %c0_41 = arith.constant 0 : index
    %c0_42 = arith.constant 0 : index
    %49 = vector.load %arg12[%c0_41, %c0_42] : memref<128x128xf32, #tpu.memory_space<vmem>>, vector<128x128xf32>
    tpu.vector_store %arg12[%c0_41, %c0_42], %48 {strides = array<i32>} : memref<128x128xf32, #tpu.memory_space<vmem>>, vector<128x128xf32>,
    return
  }
}

</mosaic_0001>

<llo_original>
// kernel: tpu_custom_call.1
$region0: #{tpu_custom_call.1}
  #allocation0 [shape = 'u32[]', space=smem, size = 0x4, offset = 0x4, fixed_abs, tag = 'smem constant byte address 0x4 - core index']
  #allocation1 [shape = 'u32[72,128]{1,0:T(1,128)}', space=vmem, size = 0x9000, scoped, tag = 'internal scratch']
  #allocation2 [shape = 'bf16[128,256]{1,0:T(8,128)(2,1)}', space=vmem, size = 0x10000, scoped, tag = 'scratch operand']
  #allocation3 [shape = 'bf16[128,256]{1,0:T(8,128)(2,1)}', space=vmem, size = 0x10000, scoped, tag = 'scratch operand']
  %s0 = inlined_call_operand.hbm [shape: bf16[128,128], index: 0, kind: input, shape index: {}]
  %s1 = inlined_call_operand.vmem [shape: f32[128,1], index: 1, kind: input, shape index: {}]
  %s2 = inlined_call_operand.hbm [shape: bf16[128,128], index: 2, kind: input, shape index: {}]
  %s3 = inlined_call_operand.vmem [shape: bf16[128,256], index: 3, kind: input, shape index: {}]
  %s4 = inlined_call_operand.hbm [shape: bf16[128,256], index: 4, kind: input, shape index: {}]
  %s5 = inlined_call_operand.vmem [shape: f32[1,256], index: 5, kind: input, shape index: {}]
  %s6 = inlined_call_operand.hbm [shape: bf16[256,256], index: 6, kind: input, shape index: {}]
  %s7 = inlined_call_operand.hbm [shape: bf16[256,256], index: 7, kind: input, shape index: {}]
  %s8 = inlined_call_operand.vmem [shape: f32[1,256], index: 8, kind: input, shape index: {}]
  %s9 = inlined_call_operand.hbm [shape: bf16[256,128], index: 9, kind: input, shape index: {}]
  %s10 = inlined_call_operand.hbm [shape: bf16[256,128], index: 10, kind: input, shape index: {}]
  %s11 = inlined_call_operand.vmem [shape: f32[1,128], index: 11, kind: input, shape index: {}]
  %s12 = inlined_call_operand.hbm [shape: f32[128,128], index: 12, kind: output, shape index: {}]
  %s13 = sld [smem:[#allocation0]]
  $region86: #{tpu_custom_call.1} parent=0
    _
  %s15 = ssub.s32 1, %s13
  %s16 = scalar_select 0, %s15, %s13
  $region1: #{tpu_custom_call.1} parent=0
    #allocation4 [shape = 'u8[32768]{0}', space=vmem, size = 0x8000, scoped, tag = 'input window, operand 0, single buffered']
    #allocation5 [shape = 's32[1]{0}', space=sflag, size = 0x4, scoped, tag = 'scoped memory for tpu_custom_call.1']
    #allocation6 [shape = 's32[1]{0}', space=sflag, size = 0x4, scoped, tag = 'scoped memory for tpu_custom_call.1']
    #allocation7 [shape = 'u8[32768]{0}', space=vmem, size = 0x8000, scoped, tag = 'input window, operand 2, single buffered']
    #allocation8 [shape = 's32[1]{0}', space=sflag, size = 0x4, scoped, tag = 'scoped memory for tpu_custom_call.1']
    #allocation9 [shape = 'u8[65536]{0}', space=vmem, size = 0x10000, scoped, tag = 'input window, operand 4, single buffered']
    #allocation10 [shape = 'u8[131072]{0}', space=vmem, size = 0x20000, scoped, tag = 'input window, operand 6, single buffered']
    #allocation11 [shape = 's32[1]{0}', space=sflag, size = 0x4, scoped, tag = 'scoped memory for tpu_custom_call.1']
    #allocation12 [shape = 'u8[131072]{0}', space=vmem, size = 0x20000, scoped, tag = 'input window, operand 7, single buffered']
    #allocation13 [shape = 'u8[65536]{0}', space=vmem, size = 0x10000, scoped, tag = 'input window, operand 9, single buffered']
    #allocation14 [shape = 's32[1]{0}', space=sflag, size = 0x4, scoped, tag = 'scoped memory for tpu_custom_call.1']
    #allocation15 [shape = 'u8[65536]{0}', space=vmem, size = 0x10000, scoped, tag = 'input window, operand 10, single buffered']
    #allocation16 [shape = 'u8[65536]{0}', space=vmem, size = 0x10000, scoped, tag = 'output window, operand 0, single buffered']
    %17 = vsyncpa [#allocation5], 0
    %18 = vsyncpa [#allocation8], 0
    %19 = vsyncpa [#allocation11], 0
    %20 = vsyncpa [#allocation14], 0
    %21 = vsyncpa [#allocation6], 0
    // Predicated region
    $region2: #{tpu_custom_call.1} parent=1 // pred_check
      _
    $region3: #{tpu_custom_call.1} parent=1 // pred_check_branch
      %23 = sbr.rel (0) target = $region5
    $region4: #{tpu_custom_call.1} parent=1 // pred_region
      %25 = vsyncadd [#allocation5], 0
      %s26 = sshll.u32 %s0, 4
      %s27 = int_to_ptr.hbm [resolvable:$true] %s26
      %s28 = sshll.u32 [#allocation4], 4
      %s29 = int_to_ptr.vmem [resolvable:$true] %s28
      %34 = dma.hbm_to_vmem [thread:$0]  %s27, 1024, %s29, [#allocation5], 64, 64, 4
    $region5: #{tpu_custom_call.1} parent=1 // pred_fallthru
      _
    // Predicated region
    $region6: #{tpu_custom_call.1} parent=1 // pred_check
      _
    $region7: #{tpu_custom_call.1} parent=1 // pred_check_branch
      %36 = sbr.rel (0) target = $region9
    $region8: #{tpu_custom_call.1} parent=1 // pred_region
      _
    $region9: #{tpu_custom_call.1} parent=1 // pred_fallthru
      _
    // Predicated region
    $region10: #{tpu_custom_call.1} parent=1 // pred_check
      _
    $region11: #{tpu_custom_call.1} parent=1 // pred_check_branch
      %38 = sbr.rel (0) target = $region13
    $region12: #{tpu_custom_call.1} parent=1 // pred_region
      %40 = vsyncadd [#allocation8], 0
      %s41 = sshll.u32 %s2, 4
      %s42 = int_to_ptr.hbm [resolvable:$true] %s41
      %s43 = sshll.u32 [#allocation7], 4
      %s44 = int_to_ptr.vmem [resolvable:$true] %s43
      %49 = dma.hbm_to_vmem [thread:$0]  %s42, 1024, %s44, [#allocation8], 64, 64, 4
    $region13: #{tpu_custom_call.1} parent=1 // pred_fallthru
      _
    // Predicated region
    $region14: #{tpu_custom_call.1} parent=1 // pred_check
      _
    $region15: #{tpu_custom_call.1} parent=1 // pred_check_branch
      %51 = sbr.rel (0) target = $region17
    $region16: #{tpu_custom_call.1} parent=1 // pred_region
      _
    $region17: #{tpu_custom_call.1} parent=1 // pred_fallthru
      _
    // Predicated region
    $region18: #{tpu_custom_call.1} parent=1 // pred_check
      _
    $region19: #{tpu_custom_call.1} parent=1 // pred_check_branch
      %53 = sbr.rel (0) target = $region21
    $region20: #{tpu_custom_call.1} parent=1 // pred_region
      %55 = vsyncadd [#allocation8], 0
      %s56 = sshll.u32 %s4, 4
      %s57 = int_to_ptr.hbm [resolvable:$true] %s56
      %s58 = sshll.u32 [#allocation9], 4
      %s59 = int_to_ptr.vmem [resolvable:$true] %s58
      %64 = dma.hbm_to_vmem [thread:$0]  %s57, 2048, %s59, [#allocation8], 128, 128, 8
    $region21: #{tpu_custom_call.1} parent=1 // pred_fallthru
      _
    // Predicated region
    $region22: #{tpu_custom_call.1} parent=1 // pred_check
      _
    $region23: #{tpu_custom_call.1} parent=1 // pred_check_branch
      %66 = sbr.rel (0) target = $region25
    $region24: #{tpu_custom_call.1} parent=1 // pred_region
      _
    $region25: #{tpu_custom_call.1} parent=1 // pred_fallthru
      _
    // Predicated region
    $region26: #{tpu_custom_call.1} parent=1 // pred_check
      _
    $region27: #{tpu_custom_call.1} parent=1 // pred_check_branch
      %68 = sbr.rel (0) target = $region29
    $region28: #{tpu_custom_call.1} parent=1 // pred_region
      %70 = vsyncadd [#allocation11], 0
      %s71 = sshll.u32 %s6, 4
      %s72 = int_to_ptr.hbm [resolvable:$true] %s71
      %s73 = sshll.u32 [#allocation10], 4
      %s74 = int_to_ptr.vmem [resolvable:$true] %s73
      %79 = dma.hbm_to_vmem [thread:$0]  %s72, 4096, %s74, [#allocation11], 128, 128, 8
    $region29: #{tpu_custom_call.1} parent=1 // pred_fallthru
      _
    // Predicated region
    $region30: #{tpu_custom_call.1} parent=1 // pred_check
      _
    $region31: #{tpu_custom_call.1} parent=1 // pred_check_branch
      %81 = sbr.rel (0) target = $region33
    $region32: #{tpu_custom_call.1} parent=1 // pred_region
      %83 = vsyncadd [#allocation11], 0
      %s84 = sshll.u32 %s7, 4
      %s85 = int_to_ptr.hbm [resolvable:$true] %s84
      %s86 = sshll.u32 [#allocation12], 4
      %s87 = int_to_ptr.vmem [resolvable:$true] %s86
      %92 = dma.hbm_to_vmem [thread:$0]  %s85, 4096, %s87, [#allocation11], 128, 128, 8
    $region33: #{tpu_custom_call.1} parent=1 // pred_fallthru
      _
    // Predicated region
    $region34: #{tpu_custom_call.1} parent=1 // pred_check
      _
    $region35: #{tpu_custom_call.1} parent=1 // pred_check_branch
      %94 = sbr.rel (0) target = $region37
    $region36: #{tpu_custom_call.1} parent=1 // pred_region
      _
    $region37: #{tpu_custom_call.1} parent=1 // pred_fallthru
      _
    // Predicated region
    $region38: #{tpu_custom_call.1} parent=1 // pred_check
      _
    $region39: #{tpu_custom_call.1} parent=1 // pred_check_branch
      %96 = sbr.rel (0) target = $region41
    $region40: #{tpu_custom_call.1} parent=1 // pred_region
      %98 = vsyncadd [#allocation14], 0
      %s99 = sshll.u32 %s9, 4
      %s100 = int_to_ptr.hbm [resolvable:$true] %s99
      %s101 = sshll.u32 [#allocation13], 4
      %s102 = int_to_ptr.vmem [resolvable:$true] %s101
      %107 = dma.hbm_to_vmem [thread:$0]  %s100, 2048, %s102, [#allocation14], 64, 64, 4
    $region41: #{tpu_custom_call.1} parent=1 // pred_fallthru
      _
    // Predicated region
    $region42: #{tpu_custom_call.1} parent=1 // pred_check
      _
    $region43: #{tpu_custom_call.1} parent=1 // pred_check_branch
      %109 = sbr.rel (0) target = $region45
    $region44: #{tpu_custom_call.1} parent=1 // pred_region
      %111 = vsyncadd [#allocation14], 0
      %s112 = sshll.u32 %s10, 4
      %s113 = int_to_ptr.hbm [resolvable:$true] %s112
      %s114 = sshll.u32 [#allocation15], 4
      %s115 = int_to_ptr.vmem [resolvable:$true] %s114
      %120 = dma.hbm_to_vmem [thread:$0]  %s113, 2048, %s115, [#allocation14], 64, 64, 4
    $region45: #{tpu_custom_call.1} parent=1 // pred_fallthru
      _
    // Predicated region
    $region46: #{tpu_custom_call.1} parent=1 // pred_check
      _
    $region47: #{tpu_custom_call.1} parent=1 // pred_check_branch
      %122 = sbr.rel (0) target = $region49
    $region48: #{tpu_custom_call.1} parent=1 // pred_region
      _
    $region49: #{tpu_custom_call.1} parent=1 // pred_fallthru
      _
    // Predicated region
    $region50: #{tpu_custom_call.1} parent=1 // pred_check
      _
    $region51: #{tpu_custom_call.1} parent=1 // pred_check_branch
      %124 = sbr.rel (0) target = $region53
    $region52: #{tpu_custom_call.1} parent=1 // pred_region
      %126 = dma.done [#allocation5], 1024
    $region53: #{tpu_custom_call.1} parent=1 // pred_fallthru
      _
    // Predicated region
    $region54: #{tpu_custom_call.1} parent=1 // pred_check
      _
    $region55: #{tpu_custom_call.1} parent=1 // pred_check_branch
      %128 = sbr.rel (0) target = $region57
    $region56: #{tpu_custom_call.1} parent=1 // pred_region
      %130 = dma.done [#allocation8], 1024
    $region57: #{tpu_custom_call.1} parent=1 // pred_fallthru
      _
    // Predicated region
    $region58: #{tpu_custom_call.1} parent=1 // pred_check
      _
    $region59: #{tpu_custom_call.1} parent=1 // pred_check_branch
      %132 = sbr.rel (0) target = $region61
    $region60: #{tpu_custom_call.1} parent=1 // pred_region
      %134 = dma.done [#allocation8], 2048
    $region61: #{tpu_custom_call.1} parent=1 // pred_fallthru
      _
    // Predicated region
    $region62: #{tpu_custom_call.1} parent=1 // pred_check
      _
    $region63: #{tpu_custom_call.1} parent=1 // pred_check_branch
      %136 = sbr.rel (0) target = $region65
    $region64: #{tpu_custom_call.1} parent=1 // pred_region
      %138 = dma.done [#allocation11], 4096
    $region65: #{tpu_custom_call.1} parent=1 // pred_fallthru
      _
    // Predicated region
    $region66: #{tpu_custom_call.1} parent=1 // pred_check
      _
    $region67: #{tpu_custom_call.1} parent=1 // pred_check_branch
      %140 = sbr.rel (0) target = $region69
    $region68: #{tpu_custom_call.1} parent=1 // pred_region
      %142 = dma.done [#allocation11], 4096
    $region69: #{tpu_custom_call.1} parent=1 // pred_fallthru
      _
    // Predicated region
    $region70: #{tpu_custom_call.1} parent=1 // pred_check
      _
    $region71: #{tpu_custom_call.1} parent=1 // pred_check_branch
      %144 = sbr.rel (0) target = $region73
    $region72: #{tpu_custom_call.1} parent=1 // pred_region
      %146 = dma.done [#allocation14], 2048
    $region73: #{tpu_custom_call.1} parent=1 // pred_fallthru
      _
    // Predicated region
    $region74: #{tpu_custom_call.1} parent=1 // pred_check
      _
    $region75: #{tpu_custom_call.1} parent=1 // pred_check_branch
      %148 = sbr.rel (0) target = $region77
    $region76: #{tpu_custom_call.1} parent=1 // pred_region
      %150 = dma.done [#allocation14], 2048
    $region77: #{tpu_custom_call.1} parent=1 // pred_fallthru
      _
    %v151 = vld [vmem:[#allocation4] sm:$0xf]
    %v152 = vld [vmem:[#allocation4 + $0x4] sm:$0xf]
    %v153 = vld [vmem:[#allocation4 + $0x8] sm:$0xf]
    %v154 = vld [vmem:[#allocation4 + $0xc] sm:$0xf]
    %v155 = vld [vmem:[#allocation4 + $0x10] sm:$0xf]
    %v156 = vld [vmem:[#allocation4 + $0x14] sm:$0xf]
    %v157 = vld [vmem:[#allocation4 + $0x18] sm:$0xf]
    %v158 = vld [vmem:[#allocation4 + $0x1c] sm:$0xf]
    %v159 = vld [vmem:[#allocation4 + $0x20] sm:$0xf]
    %v160 = vld [vmem:[#allocation4 + $0x24] sm:$0xf]
    %v161 = vld [vmem:[#allocation4 + $0x28] sm:$0xf]
    %v162 = vld [vmem:[#allocation4 + $0x2c] sm:$0xf]
    %v163 = vld [vmem:[#allocation4 + $0x30] sm:$0xf]
    %v164 = vld [vmem:[#allocation4 + $0x34] sm:$0xf]
    %v165 = vld [vmem:[#allocation4 + $0x38] sm:$0xf]
    %v166 = vld [vmem:[#allocation4 + $0x3c] sm:$0xf]
    %v167 = vld [vmem:[%s1] sm:$0xff]
    %v168 = vld [vmem:[%s1 + $0x8] sm:$0xff]
    %v169 = vld [vmem:[%s1 + $0x10] sm:$0xff]
    %v170 = vld [vmem:[%s1 + $0x18] sm:$0xff]
    %v171 = vld [vmem:[%s1 + $0x20] sm:$0xff]
    %v172 = vld [vmem:[%s1 + $0x28] sm:$0xff]
    %v173 = vld [vmem:[%s1 + $0x30] sm:$0xff]
    %v174 = vld [vmem:[%s1 + $0x38] sm:$0xff]
    %v175 = vld [vmem:[%s1 + $0x40] sm:$0xff]
    %v176 = vld [vmem:[%s1 + $0x48] sm:$0xff]
    %v177 = vld [vmem:[%s1 + $0x50] sm:$0xff]
    %v178 = vld [vmem:[%s1 + $0x58] sm:$0xff]
    %v179 = vld [vmem:[%s1 + $0x60] sm:$0xff]
    %v180 = vld [vmem:[%s1 + $0x68] sm:$0xff]
    %v181 = vld [vmem:[%s1 + $0x70] sm:$0xff]
    %v182 = vld [vmem:[%s1 + $0x78] sm:$0xff]
    %v183 = vld [vmem:[%s3] sm:$0xff]
    %v184 = vld [vmem:[%s3 + $0x8] sm:$0xff]
    %v185 = vld [vmem:[%s3 + $0x10] sm:$0xff]
    %v186 = vld [vmem:[%s3 + $0x18] sm:$0xff]
    %v187 = vld [vmem:[%s3 + $0x20] sm:$0xff]
    %v188 = vld [vmem:[%s3 + $0x28] sm:$0xff]
    %v189 = vld [vmem:[%s3 + $0x30] sm:$0xff]
    %v190 = vld [vmem:[%s3 + $0x38] sm:$0xff]
    %v191 = vld [vmem:[%s3 + $0x40] sm:$0xff]
    %v192 = vld [vmem:[%s3 + $0x48] sm:$0xff]
    %v193 = vld [vmem:[%s3 + $0x50] sm:$0xff]
    %v194 = vld [vmem:[%s3 + $0x58] sm:$0xff]
    %v195 = vld [vmem:[%s3 + $0x60] sm:$0xff]
    %v196 = vld [vmem:[%s3 + $0x68] sm:$0xff]
    %v197 = vld [vmem:[%s3 + $0x70] sm:$0xff]
    %v198 = vld [vmem:[%s3 + $0x78] sm:$0xff]
    %v199 = vld [vmem:[#allocation9] sm:$0xff]
    %v200 = vld [vmem:[#allocation9 + $0x8] sm:$0xff]
    %v201 = vld [vmem:[#allocation9 + $0x10] sm:$0xff]
    %v202 = vld [vmem:[#allocation9 + $0x18] sm:$0xff]
    %v203 = vld [vmem:[#allocation9 + $0x20] sm:$0xff]
    %v204 = vld [vmem:[#allocation9 + $0x28] sm:$0xff]
    %v205 = vld [vmem:[#allocation9 + $0x30] sm:$0xff]
    %v206 = vld [vmem:[#allocation9 + $0x38] sm:$0xff]
    %v207 = vld [vmem:[#allocation9 + $0x40] sm:$0xff]
    %v208 = vld [vmem:[#allocation9 + $0x48] sm:$0xff]
    %v209 = vld [vmem:[#allocation9 + $0x50] sm:$0xff]
    %v210 = vld [vmem:[#allocation9 + $0x58] sm:$0xff]
    %v211 = vld [vmem:[#allocation9 + $0x60] sm:$0xff]
    %v212 = vld [vmem:[#allocation9 + $0x68] sm:$0xff]
    %v213 = vld [vmem:[#allocation9 + $0x70] sm:$0xff]
    %v214 = vld [vmem:[#allocation9 + $0x78] sm:$0xff]
    %v215 = vld [vmem:[%s5] sm:$0x3]
    %v216 = vld [vmem:[#allocation7] sm:$0xf]
    %v217 = vld [vmem:[#allocation7 + $0x4] sm:$0xf]
    %v218 = vld [vmem:[#allocation7 + $0x8] sm:$0xf]
    %v219 = vld [vmem:[#allocation7 + $0xc] sm:$0xf]
    %v220 = vld [vmem:[#allocation7 + $0x10] sm:$0xf]
    %v221 = vld [vmem:[#allocation7 + $0x14] sm:$0xf]
    %v222 = vld [vmem:[#allocation7 + $0x18] sm:$0xf]
    %v223 = vld [vmem:[#allocation7 + $0x1c] sm:$0xf]
    %v224 = vld [vmem:[#allocation7 + $0x20] sm:$0xf]
    %v225 = vld [vmem:[#allocation7 + $0x24] sm:$0xf]
    %v226 = vld [vmem:[#allocation7 + $0x28] sm:$0xf]
    %v227 = vld [vmem:[#allocation7 + $0x2c] sm:$0xf]
    %v228 = vld [vmem:[#allocation7 + $0x30] sm:$0xf]
    %v229 = vld [vmem:[#allocation7 + $0x34] sm:$0xf]
    %v230 = vld [vmem:[#allocation7 + $0x38] sm:$0xf]
    %v231 = vld [vmem:[#allocation7 + $0x3c] sm:$0xf]
    %v248 = vunpack.c.l.b16 %v151
    %v249 = vunpack.c.l.b16 %v152
    %v250 = vunpack.c.l.b16 %v153
    %v251 = vunpack.c.l.b16 %v154
    %v252 = vunpack.c.l.b16 %v155
    %v253 = vunpack.c.l.b16 %v156
    %v254 = vunpack.c.l.b16 %v157
    %v255 = vunpack.c.l.b16 %v158
    %v256 = vunpack.c.l.b16 %v159
    %v257 = vunpack.c.l.b16 %v160
    %v258 = vunpack.c.l.b16 %v161
    %v259 = vunpack.c.l.b16 %v162
    %v260 = vunpack.c.l.b16 %v163
    %v261 = vunpack.c.l.b16 %v164
    %v262 = vunpack.c.l.b16 %v165
    %v263 = vunpack.c.l.b16 %v166
    %v264 = vpack.c.b16 %v249, %v248
    %v265 = vpack.c.b16 %v251, %v250
    %v266 = vpack.c.b16 %v253, %v252
    %v267 = vpack.c.b16 %v255, %v254
    %v268 = vpack.c.b16 %v257, %v256
    %v269 = vpack.c.b16 %v259, %v258
    %v270 = vpack.c.b16 %v261, %v260
    %v271 = vpack.c.b16 %v263, %v262
    %v296 = vunpack.c.l.b16 %v216
    %v297 = vunpack.c.l.b16 %v217
    %v298 = vunpack.c.l.b16 %v218
    %v299 = vunpack.c.l.b16 %v219
    %v300 = vunpack.c.l.b16 %v220
    %v301 = vunpack.c.l.b16 %v221
    %v302 = vunpack.c.l.b16 %v222
    %v303 = vunpack.c.l.b16 %v223
    %v304 = vunpack.c.l.b16 %v224
    %v305 = vunpack.c.l.b16 %v225
    %v306 = vunpack.c.l.b16 %v226
    %v307 = vunpack.c.l.b16 %v227
    %v308 = vunpack.c.l.b16 %v228
    %v309 = vunpack.c.l.b16 %v229
    %v310 = vunpack.c.l.b16 %v230
    %v311 = vunpack.c.l.b16 %v231
    %v312 = vpack.c.b16 %v297, %v296
    %v313 = vpack.c.b16 %v299, %v298
    %v314 = vpack.c.b16 %v301, %v300
    %v315 = vpack.c.b16 %v303, %v302
    %v316 = vpack.c.b16 %v305, %v304
    %v317 = vpack.c.b16 %v307, %v306
    %v318 = vpack.c.b16 %v309, %v308
    %v319 = vpack.c.b16 %v311, %v310
    %328 = vmatpush.bf16.msra.mxu0 %v319
    %329 = vmatpush.bf16.msra.mxu0 %v318
    %330 = vmatpush.bf16.msra.mxu0 %v317
    %331 = vmatpush.bf16.msra.mxu0 %v316
    %332 = vmatpush.bf16.msra.mxu0 %v315
    %333 = vmatpush.bf16.msra.mxu0 %v314
    %334 = vmatpush.bf16.msra.mxu0 %v313
    %335 = vmatpush.bf16.msra.mxu0 %v312
    %336 = vmatmul.bf16.gmra.mxu0 %v264
    %v337 = vpop.f32.mrf.mxu0
    %v338 = vadd.f32 0.0, %v337
    %v339 = vpop.f32.mrf.mxu0
    %v340 = vadd.f32 0.0, %v339
    %341 = vmatmul.bf16.gmra.mxu0 %v265
    %v342 = vpop.f32.mrf.mxu0
    %v343 = vadd.f32 0.0, %v342
    %v344 = vpop.f32.mrf.mxu0
    %v345 = vadd.f32 0.0, %v344
    %346 = vmatmul.bf16.gmra.mxu0 %v266
    %v347 = vpop.f32.mrf.mxu0
    %v348 = vadd.f32 0.0, %v347
    %v349 = vpop.f32.mrf.mxu0
    %v350 = vadd.f32 0.0, %v349
    %351 = vmatmul.bf16.gmra.mxu0 %v267
    %v352 = vpop.f32.mrf.mxu0
    %v353 = vadd.f32 0.0, %v352
    %v354 = vpop.f32.mrf.mxu0
    %v355 = vadd.f32 0.0, %v354
    %356 = vmatmul.bf16.gmra.mxu0 %v268
    %v357 = vpop.f32.mrf.mxu0
    %v358 = vadd.f32 0.0, %v357
    %v359 = vpop.f32.mrf.mxu0
    %v360 = vadd.f32 0.0, %v359
    %361 = vmatmul.bf16.gmra.mxu0 %v269
    %v362 = vpop.f32.mrf.mxu0
    %v363 = vadd.f32 0.0, %v362
    %v364 = vpop.f32.mrf.mxu0
    %v365 = vadd.f32 0.0, %v364
    %366 = vmatmul.bf16.gmra.mxu0 %v270
    %v367 = vpop.f32.mrf.mxu0
    %v368 = vadd.f32 0.0, %v367
    %v369 = vpop.f32.mrf.mxu0
    %v370 = vadd.f32 0.0, %v369
    %371 = vmatmul.bf16.gmra.mxu0 %v271
    %v372 = vpop.f32.mrf.mxu0
    %v373 = vadd.f32 0.0, %v372
    %v374 = vpop.f32.mrf.mxu0
    %v375 = vadd.f32 0.0, %v374
    %376 = vdwg.mxu0
    %378 = vset.pattern.permute.xlu0 0
    %379 = vperm.xlu0 %378, %v167
    %v380 = vpop.permute.xlu0 %379
    %383 = vset.pattern.permute.xlu0 0
    %384 = vperm.xlu0 %383, %v168
    %v385 = vpop.permute.xlu0 %384
    %388 = vset.pattern.permute.xlu0 0
    %389 = vperm.xlu0 %388, %v169
    %v390 = vpop.permute.xlu0 %389
    %393 = vset.pattern.permute.xlu0 0
    %394 = vperm.xlu0 %393, %v170
    %v395 = vpop.permute.xlu0 %394
    %398 = vset.pattern.permute.xlu0 0
    %399 = vperm.xlu0 %398, %v171
    %v400 = vpop.permute.xlu0 %399
    %403 = vset.pattern.permute.xlu0 0
    %404 = vperm.xlu0 %403, %v172
    %v405 = vpop.permute.xlu0 %404
    %408 = vset.pattern.permute.xlu0 0
    %409 = vperm.xlu0 %408, %v173
    %v410 = vpop.permute.xlu0 %409
    %413 = vset.pattern.permute.xlu0 0
    %414 = vperm.xlu0 %413, %v174
    %v415 = vpop.permute.xlu0 %414
    %418 = vset.pattern.permute.xlu0 0
    %419 = vperm.xlu0 %418, %v175
    %v420 = vpop.permute.xlu0 %419
    %423 = vset.pattern.permute.xlu0 0
    %424 = vperm.xlu0 %423, %v176
    %v425 = vpop.permute.xlu0 %424
    %428 = vset.pattern.permute.xlu0 0
    %429 = vperm.xlu0 %428, %v177
    %v430 = vpop.permute.xlu0 %429
    %433 = vset.pattern.permute.xlu0 0
    %434 = vperm.xlu0 %433, %v178
    %v435 = vpop.permute.xlu0 %434
    %438 = vset.pattern.permute.xlu0 0
    %439 = vperm.xlu0 %438, %v179
    %v440 = vpop.permute.xlu0 %439
    %443 = vset.pattern.permute.xlu0 0
    %444 = vperm.xlu0 %443, %v180
    %v445 = vpop.permute.xlu0 %444
    %448 = vset.pattern.permute.xlu0 0
    %449 = vperm.xlu0 %448, %v181
    %v450 = vpop.permute.xlu0 %449
    %453 = vset.pattern.permute.xlu0 0
    %454 = vperm.xlu0 %453, %v182
    %v455 = vpop.permute.xlu0 %454
    %v457 = vmul.f32 %v380, %v338
    %v458 = vmul.f32 %v385, %v340
    %v459 = vmul.f32 %v390, %v343
    %v460 = vmul.f32 %v395, %v345
    %v461 = vmul.f32 %v400, %v348
    %v462 = vmul.f32 %v405, %v350
    %v463 = vmul.f32 %v410, %v353
    %v464 = vmul.f32 %v415, %v355
    %v465 = vmul.f32 %v420, %v358
    %v466 = vmul.f32 %v425, %v360
    %v467 = vmul.f32 %v430, %v363
    %v468 = vmul.f32 %v435, %v365
    %v469 = vmul.f32 %v440, %v368
    %v470 = vmul.f32 %v445, %v370
    %v471 = vmul.f32 %v450, %v373
    %v472 = vmul.f32 %v455, %v375
    %v473 = vpack.c.bf16 %v458, %v457
    %v474 = vpack.c.bf16 %v460, %v459
    %v475 = vpack.c.bf16 %v462, %v461
    %v476 = vpack.c.bf16 %v464, %v463
    %v477 = vpack.c.bf16 %v466, %v465
    %v478 = vpack.c.bf16 %v468, %v467
    %v479 = vpack.c.bf16 %v470, %v469
    %v480 = vpack.c.bf16 %v472, %v471
    %v497 = vunpack.c.l.b16 %v199
    %v498 = vunpack.c.h.b16 %v199
    %v499 = vunpack.c.l.b16 %v200
    %v500 = vunpack.c.h.b16 %v200
    %v501 = vunpack.c.l.b16 %v201
    %v502 = vunpack.c.h.b16 %v201
    %v503 = vunpack.c.l.b16 %v202
    %v504 = vunpack.c.h.b16 %v202
    %v505 = vunpack.c.l.b16 %v203
    %v506 = vunpack.c.h.b16 %v203
    %v507 = vunpack.c.l.b16 %v204
    %v508 = vunpack.c.h.b16 %v204
    %v509 = vunpack.c.l.b16 %v205
    %v510 = vunpack.c.h.b16 %v205
    %v511 = vunpack.c.l.b16 %v206
    %v512 = vunpack.c.h.b16 %v206
    %v513 = vunpack.c.l.b16 %v207
    %v514 = vunpack.c.h.b16 %v207
    %v515 = vunpack.c.l.b16 %v208
    %v516 = vunpack.c.h.b16 %v208
    %v517 = vunpack.c.l.b16 %v209
    %v518 = vunpack.c.h.b16 %v209
    %v519 = vunpack.c.l.b16 %v210
    %v520 = vunpack.c.h.b16 %v210
    %v521 = vunpack.c.l.b16 %v211
    %v522 = vunpack.c.h.b16 %v211
    %v523 = vunpack.c.l.b16 %v212
    %v524 = vunpack.c.h.b16 %v212
    %v525 = vunpack.c.l.b16 %v213
    %v526 = vunpack.c.h.b16 %v213
    %v527 = vunpack.c.l.b16 %v214
    %v528 = vunpack.c.h.b16 %v214
    %v529 = vpack.c.b16 %v499, %v497
    %v530 = vpack.c.b16 %v500, %v498
    %v531 = vpack.c.b16 %v503, %v501
    %v532 = vpack.c.b16 %v504, %v502
    %v533 = vpack.c.b16 %v507, %v505
    %v534 = vpack.c.b16 %v508, %v506
    %v535 = vpack.c.b16 %v511, %v509
    %v536 = vpack.c.b16 %v512, %v510
    %v537 = vpack.c.b16 %v515, %v513
    %v538 = vpack.c.b16 %v516, %v514
    %v539 = vpack.c.b16 %v519, %v517
    %v540 = vpack.c.b16 %v520, %v518
    %v541 = vpack.c.b16 %v523, %v521
    %v542 = vpack.c.b16 %v524, %v522
    %v543 = vpack.c.b16 %v527, %v525
    %v544 = vpack.c.b16 %v528, %v526
    %561 = vmatpush.bf16.msra.mxu0 %v543
    %562 = vmatpush.bf16.msra.mxu0 %v541
    %563 = vmatpush.bf16.msra.mxu0 %v539
    %564 = vmatpush.bf16.msra.mxu0 %v537
    %565 = vmatpush.bf16.msra.mxu0 %v535
    %566 = vmatpush.bf16.msra.mxu0 %v533
    %567 = vmatpush.bf16.msra.mxu0 %v531
    %568 = vmatpush.bf16.msra.mxu0 %v529
    %569 = vmatmul.bf16.gmra.mxu0 %v312
    %v570 = vpop.f32.mrf.mxu0
    %v571 = vadd.f32 0.0, %v570
    %v572 = vpop.f32.mrf.mxu0
    %v573 = vadd.f32 0.0, %v572
    %574 = vmatmul.bf16.gmra.mxu0 %v313
    %v575 = vpop.f32.mrf.mxu0
    %v576 = vadd.f32 0.0, %v575
    %v577 = vpop.f32.mrf.mxu0
    %v578 = vadd.f32 0.0, %v577
    %579 = vmatmul.bf16.gmra.mxu0 %v314
    %v580 = vpop.f32.mrf.mxu0
    %v581 = vadd.f32 0.0, %v580
    %v582 = vpop.f32.mrf.mxu0
    %v583 = vadd.f32 0.0, %v582
    %584 = vmatmul.bf16.gmra.mxu0 %v315
    %v585 = vpop.f32.mrf.mxu0
    %v586 = vadd.f32 0.0, %v585
    %v587 = vpop.f32.mrf.mxu0
    %v588 = vadd.f32 0.0, %v587
    %589 = vmatmul.bf16.gmra.mxu0 %v316
    %v590 = vpop.f32.mrf.mxu0
    %v591 = vadd.f32 0.0, %v590
    %v592 = vpop.f32.mrf.mxu0
    %v593 = vadd.f32 0.0, %v592
    %594 = vmatmul.bf16.gmra.mxu0 %v317
    %v595 = vpop.f32.mrf.mxu0
    %v596 = vadd.f32 0.0, %v595
    %v597 = vpop.f32.mrf.mxu0
    %v598 = vadd.f32 0.0, %v597
    %599 = vmatmul.bf16.gmra.mxu0 %v318
    %v600 = vpop.f32.mrf.mxu0
    %v601 = vadd.f32 0.0, %v600
    %v602 = vpop.f32.mrf.mxu0
    %v603 = vadd.f32 0.0, %v602
    %604 = vmatmul.bf16.gmra.mxu0 %v319
    %v605 = vpop.f32.mrf.mxu0
    %v606 = vadd.f32 0.0, %v605
    %v607 = vpop.f32.mrf.mxu0
    %v608 = vadd.f32 0.0, %v607
    %609 = vdwg.mxu0
    %610 = vmatpush.bf16.msra.mxu0 %v544
    %611 = vmatpush.bf16.msra.mxu0 %v542
    %612 = vmatpush.bf16.msra.mxu0 %v540
    %613 = vmatpush.bf16.msra.mxu0 %v538
    %614 = vmatpush.bf16.msra.mxu0 %v536
    %615 = vmatpush.bf16.msra.mxu0 %v534
    %616 = vmatpush.bf16.msra.mxu0 %v532
    %617 = vmatpush.bf16.msra.mxu0 %v530
    %618 = vmatmul.bf16.gmra.mxu0 %v312
    %v619 = vpop.f32.mrf.mxu0
    %v620 = vadd.f32 0.0, %v619
    %v621 = vpop.f32.mrf.mxu0
    %v622 = vadd.f32 0.0, %v621
    %623 = vmatmul.bf16.gmra.mxu0 %v313
    %v624 = vpop.f32.mrf.mxu0
    %v625 = vadd.f32 0.0, %v624
    %v626 = vpop.f32.mrf.mxu0
    %v627 = vadd.f32 0.0, %v626
    %628 = vmatmul.bf16.gmra.mxu0 %v314
    %v629 = vpop.f32.mrf.mxu0
    %v630 = vadd.f32 0.0, %v629
    %v631 = vpop.f32.mrf.mxu0
    %v632 = vadd.f32 0.0, %v631
    %633 = vmatmul.bf16.gmra.mxu0 %v315
    %v634 = vpop.f32.mrf.mxu0
    %v635 = vadd.f32 0.0, %v634
    %v636 = vpop.f32.mrf.mxu0
    %v637 = vadd.f32 0.0, %v636
    %638 = vmatmul.bf16.gmra.mxu0 %v316
    %v639 = vpop.f32.mrf.mxu0
    %v640 = vadd.f32 0.0, %v639
    %v641 = vpop.f32.mrf.mxu0
    %v642 = vadd.f32 0.0, %v641
    %643 = vmatmul.bf16.gmra.mxu0 %v317
    %v644 = vpop.f32.mrf.mxu0
    %v645 = vadd.f32 0.0, %v644
    %v646 = vpop.f32.mrf.mxu0
    %v647 = vadd.f32 0.0, %v646
    %648 = vmatmul.bf16.gmra.mxu0 %v318
    %v649 = vpop.f32.mrf.mxu0
    %v650 = vadd.f32 0.0, %v649
    %v651 = vpop.f32.mrf.mxu0
    %v652 = vadd.f32 0.0, %v651
    %653 = vmatmul.bf16.gmra.mxu0 %v319
    %v654 = vpop.f32.mrf.mxu0
    %v655 = vadd.f32 0.0, %v654
    %v656 = vpop.f32.mrf.mxu0
    %v657 = vadd.f32 0.0, %v656
    %658 = vdwg.mxu0
    %v675 = vunpack.c.l.b16 %v183
    %v676 = vunpack.c.h.b16 %v183
    %v677 = vunpack.c.l.b16 %v184
    %v678 = vunpack.c.h.b16 %v184
    %v679 = vunpack.c.l.b16 %v185
    %v680 = vunpack.c.h.b16 %v185
    %v681 = vunpack.c.l.b16 %v186
    %v682 = vunpack.c.h.b16 %v186
    %v683 = vunpack.c.l.b16 %v187
    %v684 = vunpack.c.h.b16 %v187
    %v685 = vunpack.c.l.b16 %v188
    %v686 = vunpack.c.h.b16 %v188
    %v687 = vunpack.c.l.b16 %v189
    %v688 = vunpack.c.h.b16 %v189
    %v689 = vunpack.c.l.b16 %v190
    %v690 = vunpack.c.h.b16 %v190
    %v691 = vunpack.c.l.b16 %v191
    %v692 = vunpack.c.h.b16 %v191
    %v693 = vunpack.c.l.b16 %v192
    %v694 = vunpack.c.h.b16 %v192
    %v695 = vunpack.c.l.b16 %v193
    %v696 = vunpack.c.h.b16 %v193
    %v697 = vunpack.c.l.b16 %v194
    %v698 = vunpack.c.h.b16 %v194
    %v699 = vunpack.c.l.b16 %v195
    %v700 = vunpack.c.h.b16 %v195
    %v701 = vunpack.c.l.b16 %v196
    %v702 = vunpack.c.h.b16 %v196
    %v703 = vunpack.c.l.b16 %v197
    %v704 = vunpack.c.h.b16 %v197
    %v705 = vunpack.c.l.b16 %v198
    %v706 = vunpack.c.h.b16 %v198
    %v707 = vpack.c.b16 %v677, %v675
    %v708 = vpack.c.b16 %v678, %v676
    %v709 = vpack.c.b16 %v681, %v679
    %v710 = vpack.c.b16 %v682, %v680
    %v711 = vpack.c.b16 %v685, %v683
    %v712 = vpack.c.b16 %v686, %v684
    %v713 = vpack.c.b16 %v689, %v687
    %v714 = vpack.c.b16 %v690, %v688
    %v715 = vpack.c.b16 %v693, %v691
    %v716 = vpack.c.b16 %v694, %v692
    %v717 = vpack.c.b16 %v697, %v695
    %v718 = vpack.c.b16 %v698, %v696
    %v719 = vpack.c.b16 %v701, %v699
    %v720 = vpack.c.b16 %v702, %v700
    %v721 = vpack.c.b16 %v705, %v703
    %v722 = vpack.c.b16 %v706, %v704
    %739 = vmatpush.bf16.msra.mxu0 %v721
    %740 = vmatpush.bf16.msra.mxu0 %v719
    %741 = vmatpush.bf16.msra.mxu0 %v717
    %742 = vmatpush.bf16.msra.mxu0 %v715
    %743 = vmatpush.bf16.msra.mxu0 %v713
    %744 = vmatpush.bf16.msra.mxu0 %v711
    %745 = vmatpush.bf16.msra.mxu0 %v709
    %746 = vmatpush.bf16.msra.mxu0 %v707
    %747 = vmatmul.bf16.gmra.mxu0 %v473
    %v748 = vpop.f32.mrf.mxu0
    %v749 = vadd.f32 %v571, %v748
    %v750 = vpop.f32.mrf.mxu0
    %v751 = vadd.f32 %v573, %v750
    %752 = vmatmul.bf16.gmra.mxu0 %v474
    %v753 = vpop.f32.mrf.mxu0
    %v754 = vadd.f32 %v576, %v753
    %v755 = vpop.f32.mrf.mxu0
    %v756 = vadd.f32 %v578, %v755
    %757 = vmatmul.bf16.gmra.mxu0 %v475
    %v758 = vpop.f32.mrf.mxu0
    %v759 = vadd.f32 %v581, %v758
    %v760 = vpop.f32.mrf.mxu0
    %v761 = vadd.f32 %v583, %v760
    %762 = vmatmul.bf16.gmra.mxu0 %v476
    %v763 = vpop.f32.mrf.mxu0
    %v764 = vadd.f32 %v586, %v763
    %v765 = vpop.f32.mrf.mxu0
    %v766 = vadd.f32 %v588, %v765
    %767 = vmatmul.bf16.gmra.mxu0 %v477
    %v768 = vpop.f32.mrf.mxu0
    %v769 = vadd.f32 %v591, %v768
    %v770 = vpop.f32.mrf.mxu0
    %v771 = vadd.f32 %v593, %v770
    %772 = vmatmul.bf16.gmra.mxu0 %v478
    %v773 = vpop.f32.mrf.mxu0
    %v774 = vadd.f32 %v596, %v773
    %v775 = vpop.f32.mrf.mxu0
    %v776 = vadd.f32 %v598, %v775
    %777 = vmatmul.bf16.gmra.mxu0 %v479
    %v778 = vpop.f32.mrf.mxu0
    %v779 = vadd.f32 %v601, %v778
    %v780 = vpop.f32.mrf.mxu0
    %v781 = vadd.f32 %v603, %v780
    %782 = vmatmul.bf16.gmra.mxu0 %v480
    %v783 = vpop.f32.mrf.mxu0
    %v784 = vadd.f32 %v606, %v783
    %v785 = vpop.f32.mrf.mxu0
    %v786 = vadd.f32 %v608, %v785
    %787 = vdwg.mxu0
    %788 = vmatpush.bf16.msra.mxu0 %v722
    %789 = vmatpush.bf16.msra.mxu0 %v720
    %790 = vmatpush.bf16.msra.mxu0 %v718
    %791 = vmatpush.bf16.msra.mxu0 %v716
    %792 = vmatpush.bf16.msra.mxu0 %v714
    %793 = vmatpush.bf16.msra.mxu0 %v712
    %794 = vmatpush.bf16.msra.mxu0 %v710
    %795 = vmatpush.bf16.msra.mxu0 %v708
    %796 = vmatmul.bf16.gmra.mxu0 %v473
    %v797 = vpop.f32.mrf.mxu0
    %v798 = vadd.f32 %v620, %v797
    %v799 = vpop.f32.mrf.mxu0
    %v800 = vadd.f32 %v622, %v799
    %801 = vmatmul.bf16.gmra.mxu0 %v474
    %v802 = vpop.f32.mrf.mxu0
    %v803 = vadd.f32 %v625, %v802
    %v804 = vpop.f32.mrf.mxu0
    %v805 = vadd.f32 %v627, %v804
    %806 = vmatmul.bf16.gmra.mxu0 %v475
    %v807 = vpop.f32.mrf.mxu0
    %v808 = vadd.f32 %v630, %v807
    %v809 = vpop.f32.mrf.mxu0
    %v810 = vadd.f32 %v632, %v809
    %811 = vmatmul.bf16.gmra.mxu0 %v476
    %v812 = vpop.f32.mrf.mxu0
    %v813 = vadd.f32 %v635, %v812
    %v814 = vpop.f32.mrf.mxu0
    %v815 = vadd.f32 %v637, %v814
    %816 = vmatmul.bf16.gmra.mxu0 %v477
    %v817 = vpop.f32.mrf.mxu0
    %v818 = vadd.f32 %v640, %v817
    %v819 = vpop.f32.mrf.mxu0
    %v820 = vadd.f32 %v642, %v819
    %821 = vmatmul.bf16.gmra.mxu0 %v478
    %v822 = vpop.f32.mrf.mxu0
    %v823 = vadd.f32 %v645, %v822
    %v824 = vpop.f32.mrf.mxu0
    %v825 = vadd.f32 %v647, %v824
    %826 = vmatmul.bf16.gmra.mxu0 %v479
    %v827 = vpop.f32.mrf.mxu0
    %v828 = vadd.f32 %v650, %v827
    %v829 = vpop.f32.mrf.mxu0
    %v830 = vadd.f32 %v652, %v829
    %831 = vmatmul.bf16.gmra.mxu0 %v480
    %v832 = vpop.f32.mrf.mxu0
    %v833 = vadd.f32 %v655, %v832
    %v834 = vpop.f32.mrf.mxu0
    %v835 = vadd.f32 %v657, %v834
    %836 = vdwg.mxu0
    %v838 = vperm.slane %v215, 0
    %v839 = vperm.slane %v215, 1
    %v842 = vadd.f32 %v749, %v838
    %v843 = vadd.f32 %v798, %v839
    %v844 = vadd.f32 %v751, %v838
    %v845 = vadd.f32 %v800, %v839
    %v846 = vadd.f32 %v754, %v838
    %v847 = vadd.f32 %v803, %v839
    %v848 = vadd.f32 %v756, %v838
    %v849 = vadd.f32 %v805, %v839
    %v850 = vadd.f32 %v759, %v838
    %v851 = vadd.f32 %v808, %v839
    %v852 = vadd.f32 %v761, %v838
    %v853 = vadd.f32 %v810, %v839
    %v854 = vadd.f32 %v764, %v838
    %v855 = vadd.f32 %v813, %v839
    %v856 = vadd.f32 %v766, %v838
    %v857 = vadd.f32 %v815, %v839
    %v858 = vadd.f32 %v769, %v838
    %v859 = vadd.f32 %v818, %v839
    %v860 = vadd.f32 %v771, %v838
    %v861 = vadd.f32 %v820, %v839
    %v862 = vadd.f32 %v774, %v838
    %v863 = vadd.f32 %v823, %v839
    %v864 = vadd.f32 %v776, %v838
    %v865 = vadd.f32 %v825, %v839
    %v866 = vadd.f32 %v779, %v838
    %v867 = vadd.f32 %v828, %v839
    %v868 = vadd.f32 %v781, %v838
    %v869 = vadd.f32 %v830, %v839
    %v870 = vadd.f32 %v784, %v838
    %v871 = vadd.f32 %v833, %v839
    %v872 = vadd.f32 %v786, %v838
    %v873 = vadd.f32 %v835, %v839
    %v874 = vmax.f32 %v842, 0.0
    %v875 = vmax.f32 %v843, 0.0
    %v876 = vmax.f32 %v844, 0.0
    %v877 = vmax.f32 %v845, 0.0
    %v878 = vmax.f32 %v846, 0.0
    %v879 = vmax.f32 %v847, 0.0
    %v880 = vmax.f32 %v848, 0.0
    %v881 = vmax.f32 %v849, 0.0
    %v882 = vmax.f32 %v850, 0.0
    %v883 = vmax.f32 %v851, 0.0
    %v884 = vmax.f32 %v852, 0.0
    %v885 = vmax.f32 %v853, 0.0
    %v886 = vmax.f32 %v854, 0.0
    %v887 = vmax.f32 %v855, 0.0
    %v888 = vmax.f32 %v856, 0.0
    %v889 = vmax.f32 %v857, 0.0
    %v890 = vmax.f32 %v858, 0.0
    %v891 = vmax.f32 %v859, 0.0
    %v892 = vmax.f32 %v860, 0.0
    %v893 = vmax.f32 %v861, 0.0
    %v894 = vmax.f32 %v862, 0.0
    %v895 = vmax.f32 %v863, 0.0
    %v896 = vmax.f32 %v864, 0.0
    %v897 = vmax.f32 %v865, 0.0
    %v898 = vmax.f32 %v866, 0.0
    %v899 = vmax.f32 %v867, 0.0
    %v900 = vmax.f32 %v868, 0.0
    %v901 = vmax.f32 %v869, 0.0
    %v902 = vmax.f32 %v870, 0.0
    %v903 = vmax.f32 %v871, 0.0
    %v904 = vmax.f32 %v872, 0.0
    %v905 = vmax.f32 %v873, 0.0
    %v906 = vpack.c.bf16 %v875, %v874
    %v907 = vpack.c.bf16 %v877, %v876
    %v908 = vpack.c.bf16 %v879, %v878
    %v909 = vpack.c.bf16 %v881, %v880
    %v910 = vpack.c.bf16 %v883, %v882
    %v911 = vpack.c.bf16 %v885, %v884
    %v912 = vpack.c.bf16 %v887, %v886
    %v913 = vpack.c.bf16 %v889, %v888
    %v914 = vpack.c.bf16 %v891, %v890
    %v915 = vpack.c.bf16 %v893, %v892
    %v916 = vpack.c.bf16 %v895, %v894
    %v917 = vpack.c.bf16 %v897, %v896
    %v918 = vpack.c.bf16 %v899, %v898
    %v919 = vpack.c.bf16 %v901, %v900
    %v920 = vpack.c.bf16 %v903, %v902
    %v921 = vpack.c.bf16 %v905, %v904
    %922 = vst [vmem:[#allocation2] sm:$0xff] %v906
    %923 = vst [vmem:[#allocation2 + $0x8] sm:$0xff] %v907
    %924 = vst [vmem:[#allocation2 + $0x10] sm:$0xff] %v908
    %925 = vst [vmem:[#allocation2 + $0x18] sm:$0xff] %v909
    %926 = vst [vmem:[#allocation2 + $0x20] sm:$0xff] %v910
    %927 = vst [vmem:[#allocation2 + $0x28] sm:$0xff] %v911
    %928 = vst [vmem:[#allocation2 + $0x30] sm:$0xff] %v912
    %929 = vst [vmem:[#allocation2 + $0x38] sm:$0xff] %v913
    %930 = vst [vmem:[#allocation2 + $0x40] sm:$0xff] %v914
    %931 = vst [vmem:[#allocation2 + $0x48] sm:$0xff] %v915
    %932 = vst [vmem:[#allocation2 + $0x50] sm:$0xff] %v916
    %933 = vst [vmem:[#allocation2 + $0x58] sm:$0xff] %v917
    %934 = vst [vmem:[#allocation2 + $0x60] sm:$0xff] %v918
    %935 = vst [vmem:[#allocation2 + $0x68] sm:$0xff] %v919
    %936 = vst [vmem:[#allocation2 + $0x70] sm:$0xff] %v920
    %937 = vst [vmem:[#allocation2 + $0x78] sm:$0xff] %v921
    %v938 = vld [vmem:[#allocation10] sm:$0xff]
    %v939 = vld [vmem:[#allocation10 + $0x8] sm:$0xff]
    %v940 = vld [vmem:[#allocation10 + $0x10] sm:$0xff]
    %v941 = vld [vmem:[#allocation10 + $0x18] sm:$0xff]
    %v942 = vld [vmem:[#allocation10 + $0x20] sm:$0xff]
    %v943 = vld [vmem:[#allocation10 + $0x28] sm:$0xff]
    %v944 = vld [vmem:[#allocation10 + $0x30] sm:$0xff]
    %v945 = vld [vmem:[#allocation10 + $0x38] sm:$0xff]
    %v946 = vld [vmem:[#allocation10 + $0x40] sm:$0xff]
    %v947 = vld [vmem:[#allocation10 + $0x48] sm:$0xff]
    %v948 = vld [vmem:[#allocation10 + $0x50] sm:$0xff]
    %v949 = vld [vmem:[#allocation10 + $0x58] sm:$0xff]
    %v950 = vld [vmem:[#allocation10 + $0x60] sm:$0xff]
    %v951 = vld [vmem:[#allocation10 + $0x68] sm:$0xff]
    %v952 = vld [vmem:[#allocation10 + $0x70] sm:$0xff]
    %v953 = vld [vmem:[#allocation10 + $0x78] sm:$0xff]
    %v954 = vld [vmem:[#allocation10 + $0x80] sm:$0xff]
    %v955 = vld [vmem:[#allocation10 + $0x88] sm:$0xff]
    %v956 = vld [vmem:[#allocation10 + $0x90] sm:$0xff]
    %v957 = vld [vmem:[#allocation10 + $0x98] sm:$0xff]
    %v958 = vld [vmem:[#allocation10 + $0xa0] sm:$0xff]
    %v959 = vld [vmem:[#allocation10 + $0xa8] sm:$0xff]
    %v960 = vld [vmem:[#allocation10 + $0xb0] sm:$0xff]
    %v961 = vld [vmem:[#allocation10 + $0xb8] sm:$0xff]
    %v962 = vld [vmem:[#allocation10 + $0xc0] sm:$0xff]
    %v963 = vld [vmem:[#allocation10 + $0xc8] sm:$0xff]
    %v964 = vld [vmem:[#allocation10 + $0xd0] sm:$0xff]
    %v965 = vld [vmem:[#allocation10 + $0xd8] sm:$0xff]
    %v966 = vld [vmem:[#allocation10 + $0xe0] sm:$0xff]
    %v967 = vld [vmem:[#allocation10 + $0xe8] sm:$0xff]
    %v968 = vld [vmem:[#allocation10 + $0xf0] sm:$0xff]
    %v969 = vld [vmem:[#allocation10 + $0xf8] sm:$0xff]
    %v970 = vld [vmem:[#allocation12] sm:$0xff]
    %v971 = vld [vmem:[#allocation12 + $0x8] sm:$0xff]
    %v972 = vld [vmem:[#allocation12 + $0x10] sm:$0xff]
    %v973 = vld [vmem:[#allocation12 + $0x18] sm:$0xff]
    %v974 = vld [vmem:[#allocation12 + $0x20] sm:$0xff]
    %v975 = vld [vmem:[#allocation12 + $0x28] sm:$0xff]
    %v976 = vld [vmem:[#allocation12 + $0x30] sm:$0xff]
    %v977 = vld [vmem:[#allocation12 + $0x38] sm:$0xff]
    %v978 = vld [vmem:[#allocation12 + $0x40] sm:$0xff]
    %v979 = vld [vmem:[#allocation12 + $0x48] sm:$0xff]
    %v980 = vld [vmem:[#allocation12 + $0x50] sm:$0xff]
    %v981 = vld [vmem:[#allocation12 + $0x58] sm:$0xff]
    %v982 = vld [vmem:[#allocation12 + $0x60] sm:$0xff]
    %v983 = vld [vmem:[#allocation12 + $0x68] sm:$0xff]
    %v984 = vld [vmem:[#allocation12 + $0x70] sm:$0xff]
    %v985 = vld [vmem:[#allocation12 + $0x78] sm:$0xff]
    %v986 = vld [vmem:[#allocation12 + $0x80] sm:$0xff]
    %v987 = vld [vmem:[#allocation12 + $0x88] sm:$0xff]
    %v988 = vld [vmem:[#allocation12 + $0x90] sm:$0xff]
    %v989 = vld [vmem:[#allocation12 + $0x98] sm:$0xff]
    %v990 = vld [vmem:[#allocation12 + $0xa0] sm:$0xff]
    %v991 = vld [vmem:[#allocation12 + $0xa8] sm:$0xff]
    %v992 = vld [vmem:[#allocation12 + $0xb0] sm:$0xff]
    %v993 = vld [vmem:[#allocation12 + $0xb8] sm:$0xff]
    %v994 = vld [vmem:[#allocation12 + $0xc0] sm:$0xff]
    %v995 = vld [vmem:[#allocation12 + $0xc8] sm:$0xff]
    %v996 = vld [vmem:[#allocation12 + $0xd0] sm:$0xff]
    %v997 = vld [vmem:[#allocation12 + $0xd8] sm:$0xff]
    %v998 = vld [vmem:[#allocation12 + $0xe0] sm:$0xff]
    %v999 = vld [vmem:[#allocation12 + $0xe8] sm:$0xff]
    %v1000 = vld [vmem:[#allocation12 + $0xf0] sm:$0xff]
    %v1001 = vld [vmem:[#allocation12 + $0xf8] sm:$0xff]
    %v1002 = vld [vmem:[%s8] sm:$0x3]
    %v1003 = vld [vmem:[#allocation2] sm:$0xff]
    %v1004 = vld [vmem:[#allocation2 + $0x8] sm:$0xff]
    %v1005 = vld [vmem:[#allocation2 + $0x10] sm:$0xff]
    %v1006 = vld [vmem:[#allocation2 + $0x18] sm:$0xff]
    %v1007 = vld [vmem:[#allocation2 + $0x20] sm:$0xff]
    %v1008 = vld [vmem:[#allocation2 + $0x28] sm:$0xff]
    %v1009 = vld [vmem:[#allocation2 + $0x30] sm:$0xff]
    %v1010 = vld [vmem:[#allocation2 + $0x38] sm:$0xff]
    %v1011 = vld [vmem:[#allocation2 + $0x40] sm:$0xff]
    %v1012 = vld [vmem:[#allocation2 + $0x48] sm:$0xff]
    %v1013 = vld [vmem:[#allocation2 + $0x50] sm:$0xff]
    %v1014 = vld [vmem:[#allocation2 + $0x58] sm:$0xff]
    %v1015 = vld [vmem:[#allocation2 + $0x60] sm:$0xff]
    %v1016 = vld [vmem:[#allocation2 + $0x68] sm:$0xff]
    %v1017 = vld [vmem:[#allocation2 + $0x70] sm:$0xff]
    %v1018 = vld [vmem:[#allocation2 + $0x78] sm:$0xff]
    %v1035 = vunpack.c.l.b16 %v1003
    %v1036 = vunpack.c.h.b16 %v1003
    %v1037 = vunpack.c.l.b16 %v1004
    %v1038 = vunpack.c.h.b16 %v1004
    %v1039 = vunpack.c.l.b16 %v1005
    %v1040 = vunpack.c.h.b16 %v1005
    %v1041 = vunpack.c.l.b16 %v1006
    %v1042 = vunpack.c.h.b16 %v1006
    %v1043 = vunpack.c.l.b16 %v1007
    %v1044 = vunpack.c.h.b16 %v1007
    %v1045 = vunpack.c.l.b16 %v1008
    %v1046 = vunpack.c.h.b16 %v1008
    %v1047 = vunpack.c.l.b16 %v1009
    %v1048 = vunpack.c.h.b16 %v1009
    %v1049 = vunpack.c.l.b16 %v1010
    %v1050 = vunpack.c.h.b16 %v1010
    %v1051 = vunpack.c.l.b16 %v1011
    %v1052 = vunpack.c.h.b16 %v1011
    %v1053 = vunpack.c.l.b16 %v1012
    %v1054 = vunpack.c.h.b16 %v1012
    %v1055 = vunpack.c.l.b16 %v1013
    %v1056 = vunpack.c.h.b16 %v1013
    %v1057 = vunpack.c.l.b16 %v1014
    %v1058 = vunpack.c.h.b16 %v1014
    %v1059 = vunpack.c.l.b16 %v1015
    %v1060 = vunpack.c.h.b16 %v1015
    %v1061 = vunpack.c.l.b16 %v1016
    %v1062 = vunpack.c.h.b16 %v1016
    %v1063 = vunpack.c.l.b16 %v1017
    %v1064 = vunpack.c.h.b16 %v1017
    %v1065 = vunpack.c.l.b16 %v1018
    %v1066 = vunpack.c.h.b16 %v1018
    %v1067 = vpack.c.b16 %v1037, %v1035
    %v1068 = vpack.c.b16 %v1038, %v1036
    %v1069 = vpack.c.b16 %v1041, %v1039
    %v1070 = vpack.c.b16 %v1042, %v1040
    %v1071 = vpack.c.b16 %v1045, %v1043
    %v1072 = vpack.c.b16 %v1046, %v1044
    %v1073 = vpack.c.b16 %v1049, %v1047
    %v1074 = vpack.c.b16 %v1050, %v1048
    %v1075 = vpack.c.b16 %v1053, %v1051
    %v1076 = vpack.c.b16 %v1054, %v1052
    %v1077 = vpack.c.b16 %v1057, %v1055
    %v1078 = vpack.c.b16 %v1058, %v1056
    %v1079 = vpack.c.b16 %v1061, %v1059
    %v1080 = vpack.c.b16 %v1062, %v1060
    %v1081 = vpack.c.b16 %v1065, %v1063
    %v1082 = vpack.c.b16 %v1066, %v1064
    %1099 = vmatpush.bf16.msra.mxu0 %v1081
    %1100 = vmatpush.bf16.msra.mxu0 %v1079
    %1101 = vmatpush.bf16.msra.mxu0 %v1077
    %1102 = vmatpush.bf16.msra.mxu0 %v1075
    %1103 = vmatpush.bf16.msra.mxu0 %v1073
    %1104 = vmatpush.bf16.msra.mxu0 %v1071
    %1105 = vmatpush.bf16.msra.mxu0 %v1069
    %1106 = vmatpush.bf16.msra.mxu0 %v1067
    %1107 = vmatmul.bf16.gmra.mxu0 %v264
    %v1108 = vpop.f32.mrf.mxu0
    %v1109 = vadd.f32 0.0, %v1108
    %v1110 = vpop.f32.mrf.mxu0
    %v1111 = vadd.f32 0.0, %v1110
    %1112 = vmatmul.bf16.gmra.mxu0 %v265
    %v1113 = vpop.f32.mrf.mxu0
    %v1114 = vadd.f32 0.0, %v1113
    %v1115 = vpop.f32.mrf.mxu0
    %v1116 = vadd.f32 0.0, %v1115
    %1117 = vmatmul.bf16.gmra.mxu0 %v266
    %v1118 = vpop.f32.mrf.mxu0
    %v1119 = vadd.f32 0.0, %v1118
    %v1120 = vpop.f32.mrf.mxu0
    %v1121 = vadd.f32 0.0, %v1120
    %1122 = vmatmul.bf16.gmra.mxu0 %v267
    %v1123 = vpop.f32.mrf.mxu0
    %v1124 = vadd.f32 0.0, %v1123
    %v1125 = vpop.f32.mrf.mxu0
    %v1126 = vadd.f32 0.0, %v1125
    %1127 = vmatmul.bf16.gmra.mxu0 %v268
    %v1128 = vpop.f32.mrf.mxu0
    %v1129 = vadd.f32 0.0, %v1128
    %v1130 = vpop.f32.mrf.mxu0
    %v1131 = vadd.f32 0.0, %v1130
    %1132 = vmatmul.bf16.gmra.mxu0 %v269
    %v1133 = vpop.f32.mrf.mxu0
    %v1134 = vadd.f32 0.0, %v1133
    %v1135 = vpop.f32.mrf.mxu0
    %v1136 = vadd.f32 0.0, %v1135
    %1137 = vmatmul.bf16.gmra.mxu0 %v270
    %v1138 = vpop.f32.mrf.mxu0
    %v1139 = vadd.f32 0.0, %v1138
    %v1140 = vpop.f32.mrf.mxu0
    %v1141 = vadd.f32 0.0, %v1140
    %1142 = vmatmul.bf16.gmra.mxu0 %v271
    %v1143 = vpop.f32.mrf.mxu0
    %v1144 = vadd.f32 0.0, %v1143
    %v1145 = vpop.f32.mrf.mxu0
    %v1146 = vadd.f32 0.0, %v1145
    %1147 = vdwg.mxu0
    %1148 = vmatpush.bf16.msra.mxu0 %v1082
    %1149 = vmatpush.bf16.msra.mxu0 %v1080
    %1150 = vmatpush.bf16.msra.mxu0 %v1078
    %1151 = vmatpush.bf16.msra.mxu0 %v1076
    %1152 = vmatpush.bf16.msra.mxu0 %v1074
    %1153 = vmatpush.bf16.msra.mxu0 %v1072
    %1154 = vmatpush.bf16.msra.mxu0 %v1070
    %1155 = vmatpush.bf16.msra.mxu0 %v1068
    %1156 = vmatmul.bf16.gmra.mxu0 %v264
    %v1157 = vpop.f32.mrf.mxu0
    %v1158 = vadd.f32 0.0, %v1157
    %v1159 = vpop.f32.mrf.mxu0
    %v1160 = vadd.f32 0.0, %v1159
    %1161 = vmatmul.bf16.gmra.mxu0 %v265
    %v1162 = vpop.f32.mrf.mxu0
    %v1163 = vadd.f32 0.0, %v1162
    %v1164 = vpop.f32.mrf.mxu0
    %v1165 = vadd.f32 0.0, %v1164
    %1166 = vmatmul.bf16.gmra.mxu0 %v266
    %v1167 = vpop.f32.mrf.mxu0
    %v1168 = vadd.f32 0.0, %v1167
    %v1169 = vpop.f32.mrf.mxu0
    %v1170 = vadd.f32 0.0, %v1169
    %1171 = vmatmul.bf16.gmra.mxu0 %v267
    %v1172 = vpop.f32.mrf.mxu0
    %v1173 = vadd.f32 0.0, %v1172
    %v1174 = vpop.f32.mrf.mxu0
    %v1175 = vadd.f32 0.0, %v1174
    %1176 = vmatmul.bf16.gmra.mxu0 %v268
    %v1177 = vpop.f32.mrf.mxu0
    %v1178 = vadd.f32 0.0, %v1177
    %v1179 = vpop.f32.mrf.mxu0
    %v1180 = vadd.f32 0.0, %v1179
    %1181 = vmatmul.bf16.gmra.mxu0 %v269
    %v1182 = vpop.f32.mrf.mxu0
    %v1183 = vadd.f32 0.0, %v1182
    %v1184 = vpop.f32.mrf.mxu0
    %v1185 = vadd.f32 0.0, %v1184
    %1186 = vmatmul.bf16.gmra.mxu0 %v270
    %v1187 = vpop.f32.mrf.mxu0
    %v1188 = vadd.f32 0.0, %v1187
    %v1189 = vpop.f32.mrf.mxu0
    %v1190 = vadd.f32 0.0, %v1189
    %1191 = vmatmul.bf16.gmra.mxu0 %v271
    %v1192 = vpop.f32.mrf.mxu0
    %v1193 = vadd.f32 0.0, %v1192
    %v1194 = vpop.f32.mrf.mxu0
    %v1195 = vadd.f32 0.0, %v1194
    %1196 = vdwg.mxu0
    %v1197 = vmul.f32 %v380, %v1109
    %v1198 = vmul.f32 %v380, %v1158
    %v1199 = vmul.f32 %v385, %v1111
    %v1200 = vmul.f32 %v385, %v1160
    %v1201 = vmul.f32 %v390, %v1114
    %v1202 = vmul.f32 %v390, %v1163
    %v1203 = vmul.f32 %v395, %v1116
    %v1204 = vmul.f32 %v395, %v1165
    %v1205 = vmul.f32 %v400, %v1119
    %v1206 = vmul.f32 %v400, %v1168
    %v1207 = vmul.f32 %v405, %v1121
    %v1208 = vmul.f32 %v405, %v1170
    %v1209 = vmul.f32 %v410, %v1124
    %v1210 = vmul.f32 %v410, %v1173
    %v1211 = vmul.f32 %v415, %v1126
    %v1212 = vmul.f32 %v415, %v1175
    %v1213 = vmul.f32 %v420, %v1129
    %v1214 = vmul.f32 %v420, %v1178
    %v1215 = vmul.f32 %v425, %v1131
    %v1216 = vmul.f32 %v425, %v1180
    %v1217 = vmul.f32 %v430, %v1134
    %v1218 = vmul.f32 %v430, %v1183
    %v1219 = vmul.f32 %v435, %v1136
    %v1220 = vmul.f32 %v435, %v1185
    %v1221 = vmul.f32 %v440, %v1139
    %v1222 = vmul.f32 %v440, %v1188
    %v1223 = vmul.f32 %v445, %v1141
    %v1224 = vmul.f32 %v445, %v1190
    %v1225 = vmul.f32 %v450, %v1144
    %v1226 = vmul.f32 %v450, %v1193
    %v1227 = vmul.f32 %v455, %v1146
    %v1228 = vmul.f32 %v455, %v1195
    %v1229 = vpack.c.bf16 %v1199, %v1197
    %v1230 = vpack.c.bf16 %v1200, %v1198
    %v1231 = vpack.c.bf16 %v1203, %v1201
    %v1232 = vpack.c.bf16 %v1204, %v1202
    %v1233 = vpack.c.bf16 %v1207, %v1205
    %v1234 = vpack.c.bf16 %v1208, %v1206
    %v1235 = vpack.c.bf16 %v1211, %v1209
    %v1236 = vpack.c.bf16 %v1212, %v1210
    %v1237 = vpack.c.bf16 %v1215, %v1213
    %v1238 = vpack.c.bf16 %v1216, %v1214
    %v1239 = vpack.c.bf16 %v1219, %v1217
    %v1240 = vpack.c.bf16 %v1220, %v1218
    %v1241 = vpack.c.bf16 %v1223, %v1221
    %v1242 = vpack.c.bf16 %v1224, %v1222
    %v1243 = vpack.c.bf16 %v1227, %v1225
    %v1244 = vpack.c.bf16 %v1228, %v1226
    %v1277 = vunpack.c.l.b16 %v970
    %v1278 = vunpack.c.h.b16 %v970
    %v1279 = vunpack.c.l.b16 %v971
    %v1280 = vunpack.c.h.b16 %v971
    %v1281 = vunpack.c.l.b16 %v972
    %v1282 = vunpack.c.h.b16 %v972
    %v1283 = vunpack.c.l.b16 %v973
    %v1284 = vunpack.c.h.b16 %v973
    %v1285 = vunpack.c.l.b16 %v974
    %v1286 = vunpack.c.h.b16 %v974
    %v1287 = vunpack.c.l.b16 %v975
    %v1288 = vunpack.c.h.b16 %v975
    %v1289 = vunpack.c.l.b16 %v976
    %v1290 = vunpack.c.h.b16 %v976
    %v1291 = vunpack.c.l.b16 %v977
    %v1292 = vunpack.c.h.b16 %v977
    %v1293 = vunpack.c.l.b16 %v978
    %v1294 = vunpack.c.h.b16 %v978
    %v1295 = vunpack.c.l.b16 %v979
    %v1296 = vunpack.c.h.b16 %v979
    %v1297 = vunpack.c.l.b16 %v980
    %v1298 = vunpack.c.h.b16 %v980
    %v1299 = vunpack.c.l.b16 %v981
    %v1300 = vunpack.c.h.b16 %v981
    %v1301 = vunpack.c.l.b16 %v982
    %v1302 = vunpack.c.h.b16 %v982
    %v1303 = vunpack.c.l.b16 %v983
    %v1304 = vunpack.c.h.b16 %v983
    %v1305 = vunpack.c.l.b16 %v984
    %v1306 = vunpack.c.h.b16 %v984
    %v1307 = vunpack.c.l.b16 %v985
    %v1308 = vunpack.c.h.b16 %v985
    %v1309 = vunpack.c.l.b16 %v986
    %v1310 = vunpack.c.h.b16 %v986
    %v1311 = vunpack.c.l.b16 %v987
    %v1312 = vunpack.c.h.b16 %v987
    %v1313 = vunpack.c.l.b16 %v988
    %v1314 = vunpack.c.h.b16 %v988
    %v1315 = vunpack.c.l.b16 %v989
    %v1316 = vunpack.c.h.b16 %v989
    %v1317 = vunpack.c.l.b16 %v990
    %v1318 = vunpack.c.h.b16 %v990
    %v1319 = vunpack.c.l.b16 %v991
    %v1320 = vunpack.c.h.b16 %v991
    %v1321 = vunpack.c.l.b16 %v992
    %v1322 = vunpack.c.h.b16 %v992
    %v1323 = vunpack.c.l.b16 %v993
    %v1324 = vunpack.c.h.b16 %v993
    %v1325 = vunpack.c.l.b16 %v994
    %v1326 = vunpack.c.h.b16 %v994
    %v1327 = vunpack.c.l.b16 %v995
    %v1328 = vunpack.c.h.b16 %v995
    %v1329 = vunpack.c.l.b16 %v996
    %v1330 = vunpack.c.h.b16 %v996
    %v1331 = vunpack.c.l.b16 %v997
    %v1332 = vunpack.c.h.b16 %v997
    %v1333 = vunpack.c.l.b16 %v998
    %v1334 = vunpack.c.h.b16 %v998
    %v1335 = vunpack.c.l.b16 %v999
    %v1336 = vunpack.c.h.b16 %v999
    %v1337 = vunpack.c.l.b16 %v1000
    %v1338 = vunpack.c.h.b16 %v1000
    %v1339 = vunpack.c.l.b16 %v1001
    %v1340 = vunpack.c.h.b16 %v1001
    %v1341 = vpack.c.b16 %v1279, %v1277
    %v1342 = vpack.c.b16 %v1280, %v1278
    %v1343 = vpack.c.b16 %v1283, %v1281
    %v1344 = vpack.c.b16 %v1284, %v1282
    %v1345 = vpack.c.b16 %v1287, %v1285
    %v1346 = vpack.c.b16 %v1288, %v1286
    %v1347 = vpack.c.b16 %v1291, %v1289
    %v1348 = vpack.c.b16 %v1292, %v1290
    %v1349 = vpack.c.b16 %v1295, %v1293
    %v1350 = vpack.c.b16 %v1296, %v1294
    %v1351 = vpack.c.b16 %v1299, %v1297
    %v1352 = vpack.c.b16 %v1300, %v1298
    %v1353 = vpack.c.b16 %v1303, %v1301
    %v1354 = vpack.c.b16 %v1304, %v1302
    %v1355 = vpack.c.b16 %v1307, %v1305
    %v1356 = vpack.c.b16 %v1308, %v1306
    %v1357 = vpack.c.b16 %v1311, %v1309
    %v1358 = vpack.c.b16 %v1312, %v1310
    %v1359 = vpack.c.b16 %v1315, %v1313
    %v1360 = vpack.c.b16 %v1316, %v1314
    %v1361 = vpack.c.b16 %v1319, %v1317
    %v1362 = vpack.c.b16 %v1320, %v1318
    %v1363 = vpack.c.b16 %v1323, %v1321
    %v1364 = vpack.c.b16 %v1324, %v1322
    %v1365 = vpack.c.b16 %v1327, %v1325
    %v1366 = vpack.c.b16 %v1328, %v1326
    %v1367 = vpack.c.b16 %v1331, %v1329
    %v1368 = vpack.c.b16 %v1332, %v1330
    %v1369 = vpack.c.b16 %v1335, %v1333
    %v1370 = vpack.c.b16 %v1336, %v1334
    %v1371 = vpack.c.b16 %v1339, %v1337
    %v1372 = vpack.c.b16 %v1340, %v1338
    %1405 = vmatpush.bf16.msra.mxu0 %v1355
    %1406 = vmatpush.bf16.msra.mxu0 %v1353
    %1407 = vmatpush.bf16.msra.mxu0 %v1351
    %1408 = vmatpush.bf16.msra.mxu0 %v1349
    %1409 = vmatpush.bf16.msra.mxu0 %v1347
    %1410 = vmatpush.bf16.msra.mxu0 %v1345
    %1411 = vmatpush.bf16.msra.mxu0 %v1343
    %1412 = vmatpush.bf16.msra.mxu0 %v1341
    %1413 = vmatmul.bf16.gmra.mxu0 %v1067
    %v1414 = vpop.f32.mrf.mxu0
    %v1415 = vadd.f32 0.0, %v1414
    %v1416 = vpop.f32.mrf.mxu0
    %v1417 = vadd.f32 0.0, %v1416
    %1418 = vmatmul.bf16.gmra.mxu0 %v1069
    %v1419 = vpop.f32.mrf.mxu0
    %v1420 = vadd.f32 0.0, %v1419
    %v1421 = vpop.f32.mrf.mxu0
    %v1422 = vadd.f32 0.0, %v1421
    %1423 = vmatmul.bf16.gmra.mxu0 %v1071
    %v1424 = vpop.f32.mrf.mxu0
    %v1425 = vadd.f32 0.0, %v1424
    %v1426 = vpop.f32.mrf.mxu0
    %v1427 = vadd.f32 0.0, %v1426
    %1428 = vmatmul.bf16.gmra.mxu0 %v1073
    %v1429 = vpop.f32.mrf.mxu0
    %v1430 = vadd.f32 0.0, %v1429
    %v1431 = vpop.f32.mrf.mxu0
    %v1432 = vadd.f32 0.0, %v1431
    %1433 = vmatmul.bf16.gmra.mxu0 %v1075
    %v1434 = vpop.f32.mrf.mxu0
    %v1435 = vadd.f32 0.0, %v1434
    %v1436 = vpop.f32.mrf.mxu0
    %v1437 = vadd.f32 0.0, %v1436
    %1438 = vmatmul.bf16.gmra.mxu0 %v1077
    %v1439 = vpop.f32.mrf.mxu0
    %v1440 = vadd.f32 0.0, %v1439
    %v1441 = vpop.f32.mrf.mxu0
    %v1442 = vadd.f32 0.0, %v1441
    %1443 = vmatmul.bf16.gmra.mxu0 %v1079
    %v1444 = vpop.f32.mrf.mxu0
    %v1445 = vadd.f32 0.0, %v1444
    %v1446 = vpop.f32.mrf.mxu0
    %v1447 = vadd.f32 0.0, %v1446
    %1448 = vmatmul.bf16.gmra.mxu0 %v1081
    %v1449 = vpop.f32.mrf.mxu0
    %v1450 = vadd.f32 0.0, %v1449
    %v1451 = vpop.f32.mrf.mxu0
    %v1452 = vadd.f32 0.0, %v1451
    %1453 = vdwg.mxu0
    %1454 = vmatpush.bf16.msra.mxu0 %v1371
    %1455 = vmatpush.bf16.msra.mxu0 %v1369
    %1456 = vmatpush.bf16.msra.mxu0 %v1367
    %1457 = vmatpush.bf16.msra.mxu0 %v1365
    %1458 = vmatpush.bf16.msra.mxu0 %v1363
    %1459 = vmatpush.bf16.msra.mxu0 %v1361
    %1460 = vmatpush.bf16.msra.mxu0 %v1359
    %1461 = vmatpush.bf16.msra.mxu0 %v1357
    %1462 = vmatmul.bf16.gmra.mxu0 %v1068
    %v1463 = vpop.f32.mrf.mxu0
    %v1464 = vadd.f32 %v1415, %v1463
    %v1465 = vpop.f32.mrf.mxu0
    %v1466 = vadd.f32 %v1417, %v1465
    %1467 = vmatmul.bf16.gmra.mxu0 %v1070
    %v1468 = vpop.f32.mrf.mxu0
    %v1469 = vadd.f32 %v1420, %v1468
    %v1470 = vpop.f32.mrf.mxu0
    %v1471 = vadd.f32 %v1422, %v1470
    %1472 = vmatmul.bf16.gmra.mxu0 %v1072
    %v1473 = vpop.f32.mrf.mxu0
    %v1474 = vadd.f32 %v1425, %v1473
    %v1475 = vpop.f32.mrf.mxu0
    %v1476 = vadd.f32 %v1427, %v1475
    %1477 = vmatmul.bf16.gmra.mxu0 %v1074
    %v1478 = vpop.f32.mrf.mxu0
    %v1479 = vadd.f32 %v1430, %v1478
    %v1480 = vpop.f32.mrf.mxu0
    %v1481 = vadd.f32 %v1432, %v1480
    %1482 = vmatmul.bf16.gmra.mxu0 %v1076
    %v1483 = vpop.f32.mrf.mxu0
    %v1484 = vadd.f32 %v1435, %v1483
    %v1485 = vpop.f32.mrf.mxu0
    %v1486 = vadd.f32 %v1437, %v1485
    %1487 = vmatmul.bf16.gmra.mxu0 %v1078
    %v1488 = vpop.f32.mrf.mxu0
    %v1489 = vadd.f32 %v1440, %v1488
    %v1490 = vpop.f32.mrf.mxu0
    %v1491 = vadd.f32 %v1442, %v1490
    %1492 = vmatmul.bf16.gmra.mxu0 %v1080
    %v1493 = vpop.f32.mrf.mxu0
    %v1494 = vadd.f32 %v1445, %v1493
    %v1495 = vpop.f32.mrf.mxu0
    %v1496 = vadd.f32 %v1447, %v1495
    %1497 = vmatmul.bf16.gmra.mxu0 %v1082
    %v1498 = vpop.f32.mrf.mxu0
    %v1499 = vadd.f32 %v1450, %v1498
    %v1500 = vpop.f32.mrf.mxu0
    %v1501 = vadd.f32 %v1452, %v1500
    %1502 = vdwg.mxu0
    %1503 = vmatpush.bf16.msra.mxu0 %v1356
    %1504 = vmatpush.bf16.msra.mxu0 %v1354
    %1505 = vmatpush.bf16.msra.mxu0 %v1352
    %1506 = vmatpush.bf16.msra.mxu0 %v1350
    %1507 = vmatpush.bf16.msra.mxu0 %v1348
    %1508 = vmatpush.bf16.msra.mxu0 %v1346
    %1509 = vmatpush.bf16.msra.mxu0 %v1344
    %1510 = vmatpush.bf16.msra.mxu0 %v1342
    %1511 = vmatmul.bf16.gmra.mxu0 %v1067
    %v1512 = vpop.f32.mrf.mxu0
    %v1513 = vadd.f32 0.0, %v1512
    %v1514 = vpop.f32.mrf.mxu0
    %v1515 = vadd.f32 0.0, %v1514
    %1516 = vmatmul.bf16.gmra.mxu0 %v1069
    %v1517 = vpop.f32.mrf.mxu0
    %v1518 = vadd.f32 0.0, %v1517
    %v1519 = vpop.f32.mrf.mxu0
    %v1520 = vadd.f32 0.0, %v1519
    %1521 = vmatmul.bf16.gmra.mxu0 %v1071
    %v1522 = vpop.f32.mrf.mxu0
    %v1523 = vadd.f32 0.0, %v1522
    %v1524 = vpop.f32.mrf.mxu0
    %v1525 = vadd.f32 0.0, %v1524
    %1526 = vmatmul.bf16.gmra.mxu0 %v1073
    %v1527 = vpop.f32.mrf.mxu0
    %v1528 = vadd.f32 0.0, %v1527
    %v1529 = vpop.f32.mrf.mxu0
    %v1530 = vadd.f32 0.0, %v1529
    %1531 = vmatmul.bf16.gmra.mxu0 %v1075
    %v1532 = vpop.f32.mrf.mxu0
    %v1533 = vadd.f32 0.0, %v1532
    %v1534 = vpop.f32.mrf.mxu0
    %v1535 = vadd.f32 0.0, %v1534
    %1536 = vmatmul.bf16.gmra.mxu0 %v1077
    %v1537 = vpop.f32.mrf.mxu0
    %v1538 = vadd.f32 0.0, %v1537
    %v1539 = vpop.f32.mrf.mxu0
    %v1540 = vadd.f32 0.0, %v1539
    %1541 = vmatmul.bf16.gmra.mxu0 %v1079
    %v1542 = vpop.f32.mrf.mxu0
    %v1543 = vadd.f32 0.0, %v1542
    %v1544 = vpop.f32.mrf.mxu0
    %v1545 = vadd.f32 0.0, %v1544
    %1546 = vmatmul.bf16.gmra.mxu0 %v1081
    %v1547 = vpop.f32.mrf.mxu0
    %v1548 = vadd.f32 0.0, %v1547
    %v1549 = vpop.f32.mrf.mxu0
    %v1550 = vadd.f32 0.0, %v1549
    %1551 = vdwg.mxu0
    %1552 = vmatpush.bf16.msra.mxu0 %v1372
    %1553 = vmatpush.bf16.msra.mxu0 %v1370
    %1554 = vmatpush.bf16.msra.mxu0 %v1368
    %1555 = vmatpush.bf16.msra.mxu0 %v1366
    %1556 = vmatpush.bf16.msra.mxu0 %v1364
    %1557 = vmatpush.bf16.msra.mxu0 %v1362
    %1558 = vmatpush.bf16.msra.mxu0 %v1360
    %1559 = vmatpush.bf16.msra.mxu0 %v1358
    %1560 = vmatmul.bf16.gmra.mxu0 %v1068
    %v1561 = vpop.f32.mrf.mxu0
    %v1562 = vadd.f32 %v1513, %v1561
    %v1563 = vpop.f32.mrf.mxu0
    %v1564 = vadd.f32 %v1515, %v1563
    %1565 = vmatmul.bf16.gmra.mxu0 %v1070
    %v1566 = vpop.f32.mrf.mxu0
    %v1567 = vadd.f32 %v1518, %v1566
    %v1568 = vpop.f32.mrf.mxu0
    %v1569 = vadd.f32 %v1520, %v1568
    %1570 = vmatmul.bf16.gmra.mxu0 %v1072
    %v1571 = vpop.f32.mrf.mxu0
    %v1572 = vadd.f32 %v1523, %v1571
    %v1573 = vpop.f32.mrf.mxu0
    %v1574 = vadd.f32 %v1525, %v1573
    %1575 = vmatmul.bf16.gmra.mxu0 %v1074
    %v1576 = vpop.f32.mrf.mxu0
    %v1577 = vadd.f32 %v1528, %v1576
    %v1578 = vpop.f32.mrf.mxu0
    %v1579 = vadd.f32 %v1530, %v1578
    %1580 = vmatmul.bf16.gmra.mxu0 %v1076
    %v1581 = vpop.f32.mrf.mxu0
    %v1582 = vadd.f32 %v1533, %v1581
    %v1583 = vpop.f32.mrf.mxu0
    %v1584 = vadd.f32 %v1535, %v1583
    %1585 = vmatmul.bf16.gmra.mxu0 %v1078
    %v1586 = vpop.f32.mrf.mxu0
    %v1587 = vadd.f32 %v1538, %v1586
    %v1588 = vpop.f32.mrf.mxu0
    %v1589 = vadd.f32 %v1540, %v1588
    %1590 = vmatmul.bf16.gmra.mxu0 %v1080
    %v1591 = vpop.f32.mrf.mxu0
    %v1592 = vadd.f32 %v1543, %v1591
    %v1593 = vpop.f32.mrf.mxu0
    %v1594 = vadd.f32 %v1545, %v1593
    %1595 = vmatmul.bf16.gmra.mxu0 %v1082
    %v1596 = vpop.f32.mrf.mxu0
    %v1597 = vadd.f32 %v1548, %v1596
    %v1598 = vpop.f32.mrf.mxu0
    %v1599 = vadd.f32 %v1550, %v1598
    %1600 = vdwg.mxu0
    %v1633 = vunpack.c.l.b16 %v938
    %v1634 = vunpack.c.h.b16 %v938
    %v1635 = vunpack.c.l.b16 %v939
    %v1636 = vunpack.c.h.b16 %v939
    %v1637 = vunpack.c.l.b16 %v940
    %v1638 = vunpack.c.h.b16 %v940
    %v1639 = vunpack.c.l.b16 %v941
    %v1640 = vunpack.c.h.b16 %v941
    %v1641 = vunpack.c.l.b16 %v942
    %v1642 = vunpack.c.h.b16 %v942
    %v1643 = vunpack.c.l.b16 %v943
    %v1644 = vunpack.c.h.b16 %v943
    %v1645 = vunpack.c.l.b16 %v944
    %v1646 = vunpack.c.h.b16 %v944
    %v1647 = vunpack.c.l.b16 %v945
    %v1648 = vunpack.c.h.b16 %v945
    %v1649 = vunpack.c.l.b16 %v946
    %v1650 = vunpack.c.h.b16 %v946
    %v1651 = vunpack.c.l.b16 %v947
    %v1652 = vunpack.c.h.b16 %v947
    %v1653 = vunpack.c.l.b16 %v948
    %v1654 = vunpack.c.h.b16 %v948
    %v1655 = vunpack.c.l.b16 %v949
    %v1656 = vunpack.c.h.b16 %v949
    %v1657 = vunpack.c.l.b16 %v950
    %v1658 = vunpack.c.h.b16 %v950
    %v1659 = vunpack.c.l.b16 %v951
    %v1660 = vunpack.c.h.b16 %v951
    %v1661 = vunpack.c.l.b16 %v952
    %v1662 = vunpack.c.h.b16 %v952
    %v1663 = vunpack.c.l.b16 %v953
    %v1664 = vunpack.c.h.b16 %v953
    %v1665 = vunpack.c.l.b16 %v954
    %v1666 = vunpack.c.h.b16 %v954
    %v1667 = vunpack.c.l.b16 %v955
    %v1668 = vunpack.c.h.b16 %v955
    %v1669 = vunpack.c.l.b16 %v956
    %v1670 = vunpack.c.h.b16 %v956
    %v1671 = vunpack.c.l.b16 %v957
    %v1672 = vunpack.c.h.b16 %v957
    %v1673 = vunpack.c.l.b16 %v958
    %v1674 = vunpack.c.h.b16 %v958
    %v1675 = vunpack.c.l.b16 %v959
    %v1676 = vunpack.c.h.b16 %v959
    %v1677 = vunpack.c.l.b16 %v960
    %v1678 = vunpack.c.h.b16 %v960
    %v1679 = vunpack.c.l.b16 %v961
    %v1680 = vunpack.c.h.b16 %v961
    %v1681 = vunpack.c.l.b16 %v962
    %v1682 = vunpack.c.h.b16 %v962
    %v1683 = vunpack.c.l.b16 %v963
    %v1684 = vunpack.c.h.b16 %v963
    %v1685 = vunpack.c.l.b16 %v964
    %v1686 = vunpack.c.h.b16 %v964
    %v1687 = vunpack.c.l.b16 %v965
    %v1688 = vunpack.c.h.b16 %v965
    %v1689 = vunpack.c.l.b16 %v966
    %v1690 = vunpack.c.h.b16 %v966
    %v1691 = vunpack.c.l.b16 %v967
    %v1692 = vunpack.c.h.b16 %v967
    %v1693 = vunpack.c.l.b16 %v968
    %v1694 = vunpack.c.h.b16 %v968
    %v1695 = vunpack.c.l.b16 %v969
    %v1696 = vunpack.c.h.b16 %v969
    %v1697 = vpack.c.b16 %v1635, %v1633
    %v1698 = vpack.c.b16 %v1636, %v1634
    %v1699 = vpack.c.b16 %v1639, %v1637
    %v1700 = vpack.c.b16 %v1640, %v1638
    %v1701 = vpack.c.b16 %v1643, %v1641
    %v1702 = vpack.c.b16 %v1644, %v1642
    %v1703 = vpack.c.b16 %v1647, %v1645
    %v1704 = vpack.c.b16 %v1648, %v1646
    %v1705 = vpack.c.b16 %v1651, %v1649
    %v1706 = vpack.c.b16 %v1652, %v1650
    %v1707 = vpack.c.b16 %v1655, %v1653
    %v1708 = vpack.c.b16 %v1656, %v1654
    %v1709 = vpack.c.b16 %v1659, %v1657
    %v1710 = vpack.c.b16 %v1660, %v1658
    %v1711 = vpack.c.b16 %v1663, %v1661
    %v1712 = vpack.c.b16 %v1664, %v1662
    %v1713 = vpack.c.b16 %v1667, %v1665
    %v1714 = vpack.c.b16 %v1668, %v1666
    %v1715 = vpack.c.b16 %v1671, %v1669
    %v1716 = vpack.c.b16 %v1672, %v1670
    %v1717 = vpack.c.b16 %v1675, %v1673
    %v1718 = vpack.c.b16 %v1676, %v1674
    %v1719 = vpack.c.b16 %v1679, %v1677
    %v1720 = vpack.c.b16 %v1680, %v1678
    %v1721 = vpack.c.b16 %v1683, %v1681
    %v1722 = vpack.c.b16 %v1684, %v1682
    %v1723 = vpack.c.b16 %v1687, %v1685
    %v1724 = vpack.c.b16 %v1688, %v1686
    %v1725 = vpack.c.b16 %v1691, %v1689
    %v1726 = vpack.c.b16 %v1692, %v1690
    %v1727 = vpack.c.b16 %v1695, %v1693
    %v1728 = vpack.c.b16 %v1696, %v1694
    %1761 = vmatpush.bf16.msra.mxu0 %v1711
    %1762 = vmatpush.bf16.msra.mxu0 %v1709
    %1763 = vmatpush.bf16.msra.mxu0 %v1707
    %1764 = vmatpush.bf16.msra.mxu0 %v1705
    %1765 = vmatpush.bf16.msra.mxu0 %v1703
    %1766 = vmatpush.bf16.msra.mxu0 %v1701
    %1767 = vmatpush.bf16.msra.mxu0 %v1699
    %1768 = vmatpush.bf16.msra.mxu0 %v1697
    %1769 = vmatmul.bf16.gmra.mxu0 %v1229
    %v1770 = vpop.f32.mrf.mxu0
    %v1771 = vadd.f32 %v1464, %v1770
    %v1772 = vpop.f32.mrf.mxu0
    %v1773 = vadd.f32 %v1466, %v1772
    %1774 = vmatmul.bf16.gmra.mxu0 %v1231
    %v1775 = vpop.f32.mrf.mxu0
    %v1776 = vadd.f32 %v1469, %v1775
    %v1777 = vpop.f32.mrf.mxu0
    %v1778 = vadd.f32 %v1471, %v1777
    %1779 = vmatmul.bf16.gmra.mxu0 %v1233
    %v1780 = vpop.f32.mrf.mxu0
    %v1781 = vadd.f32 %v1474, %v1780
    %v1782 = vpop.f32.mrf.mxu0
    %v1783 = vadd.f32 %v1476, %v1782
    %1784 = vmatmul.bf16.gmra.mxu0 %v1235
    %v1785 = vpop.f32.mrf.mxu0
    %v1786 = vadd.f32 %v1479, %v1785
    %v1787 = vpop.f32.mrf.mxu0
    %v1788 = vadd.f32 %v1481, %v1787
    %1789 = vmatmul.bf16.gmra.mxu0 %v1237
    %v1790 = vpop.f32.mrf.mxu0
    %v1791 = vadd.f32 %v1484, %v1790
    %v1792 = vpop.f32.mrf.mxu0
    %v1793 = vadd.f32 %v1486, %v1792
    %1794 = vmatmul.bf16.gmra.mxu0 %v1239
    %v1795 = vpop.f32.mrf.mxu0
    %v1796 = vadd.f32 %v1489, %v1795
    %v1797 = vpop.f32.mrf.mxu0
    %v1798 = vadd.f32 %v1491, %v1797
    %1799 = vmatmul.bf16.gmra.mxu0 %v1241
    %v1800 = vpop.f32.mrf.mxu0
    %v1801 = vadd.f32 %v1494, %v1800
    %v1802 = vpop.f32.mrf.mxu0
    %v1803 = vadd.f32 %v1496, %v1802
    %1804 = vmatmul.bf16.gmra.mxu0 %v1243
    %v1805 = vpop.f32.mrf.mxu0
    %v1806 = vadd.f32 %v1499, %v1805
    %v1807 = vpop.f32.mrf.mxu0
    %v1808 = vadd.f32 %v1501, %v1807
    %1809 = vdwg.mxu0
    %1810 = vmatpush.bf16.msra.mxu0 %v1727
    %1811 = vmatpush.bf16.msra.mxu0 %v1725
    %1812 = vmatpush.bf16.msra.mxu0 %v1723
    %1813 = vmatpush.bf16.msra.mxu0 %v1721
    %1814 = vmatpush.bf16.msra.mxu0 %v1719
    %1815 = vmatpush.bf16.msra.mxu0 %v1717
    %1816 = vmatpush.bf16.msra.mxu0 %v1715
    %1817 = vmatpush.bf16.msra.mxu0 %v1713
    %1818 = vmatmul.bf16.gmra.mxu0 %v1230
    %v1819 = vpop.f32.mrf.mxu0
    %v1820 = vadd.f32 %v1771, %v1819
    %v1821 = vpop.f32.mrf.mxu0
    %v1822 = vadd.f32 %v1773, %v1821
    %1823 = vmatmul.bf16.gmra.mxu0 %v1232
    %v1824 = vpop.f32.mrf.mxu0
    %v1825 = vadd.f32 %v1776, %v1824
    %v1826 = vpop.f32.mrf.mxu0
    %v1827 = vadd.f32 %v1778, %v1826
    %1828 = vmatmul.bf16.gmra.mxu0 %v1234
    %v1829 = vpop.f32.mrf.mxu0
    %v1830 = vadd.f32 %v1781, %v1829
    %v1831 = vpop.f32.mrf.mxu0
    %v1832 = vadd.f32 %v1783, %v1831
    %1833 = vmatmul.bf16.gmra.mxu0 %v1236
    %v1834 = vpop.f32.mrf.mxu0
    %v1835 = vadd.f32 %v1786, %v1834
    %v1836 = vpop.f32.mrf.mxu0
    %v1837 = vadd.f32 %v1788, %v1836
    %1838 = vmatmul.bf16.gmra.mxu0 %v1238
    %v1839 = vpop.f32.mrf.mxu0
    %v1840 = vadd.f32 %v1791, %v1839
    %v1841 = vpop.f32.mrf.mxu0
    %v1842 = vadd.f32 %v1793, %v1841
    %1843 = vmatmul.bf16.gmra.mxu0 %v1240
    %v1844 = vpop.f32.mrf.mxu0
    %v1845 = vadd.f32 %v1796, %v1844
    %v1846 = vpop.f32.mrf.mxu0
    %v1847 = vadd.f32 %v1798, %v1846
    %1848 = vmatmul.bf16.gmra.mxu0 %v1242
    %v1849 = vpop.f32.mrf.mxu0
    %v1850 = vadd.f32 %v1801, %v1849
    %v1851 = vpop.f32.mrf.mxu0
    %v1852 = vadd.f32 %v1803, %v1851
    %1853 = vmatmul.bf16.gmra.mxu0 %v1244
    %v1854 = vpop.f32.mrf.mxu0
    %v1855 = vadd.f32 %v1806, %v1854
    %v1856 = vpop.f32.mrf.mxu0
    %v1857 = vadd.f32 %v1808, %v1856
    %1858 = vdwg.mxu0
    %1859 = vmatpush.bf16.msra.mxu0 %v1712
    %1860 = vmatpush.bf16.msra.mxu0 %v1710
    %1861 = vmatpush.bf16.msra.mxu0 %v1708
    %1862 = vmatpush.bf16.msra.mxu0 %v1706
    %1863 = vmatpush.bf16.msra.mxu0 %v1704
    %1864 = vmatpush.bf16.msra.mxu0 %v1702
    %1865 = vmatpush.bf16.msra.mxu0 %v1700
    %1866 = vmatpush.bf16.msra.mxu0 %v1698
    %1867 = vmatmul.bf16.gmra.mxu0 %v1229
    %v1868 = vpop.f32.mrf.mxu0
    %v1869 = vadd.f32 %v1562, %v1868
    %v1870 = vpop.f32.mrf.mxu0
    %v1871 = vadd.f32 %v1564, %v1870
    %1872 = vmatmul.bf16.gmra.mxu0 %v1231
    %v1873 = vpop.f32.mrf.mxu0
    %v1874 = vadd.f32 %v1567, %v1873
    %v1875 = vpop.f32.mrf.mxu0
    %v1876 = vadd.f32 %v1569, %v1875
    %1877 = vmatmul.bf16.gmra.mxu0 %v1233
    %v1878 = vpop.f32.mrf.mxu0
    %v1879 = vadd.f32 %v1572, %v1878
    %v1880 = vpop.f32.mrf.mxu0
    %v1881 = vadd.f32 %v1574, %v1880
    %1882 = vmatmul.bf16.gmra.mxu0 %v1235
    %v1883 = vpop.f32.mrf.mxu0
    %v1884 = vadd.f32 %v1577, %v1883
    %v1885 = vpop.f32.mrf.mxu0
    %v1886 = vadd.f32 %v1579, %v1885
    %1887 = vmatmul.bf16.gmra.mxu0 %v1237
    %v1888 = vpop.f32.mrf.mxu0
    %v1889 = vadd.f32 %v1582, %v1888
    %v1890 = vpop.f32.mrf.mxu0
    %v1891 = vadd.f32 %v1584, %v1890
    %1892 = vmatmul.bf16.gmra.mxu0 %v1239
    %v1893 = vpop.f32.mrf.mxu0
    %v1894 = vadd.f32 %v1587, %v1893
    %v1895 = vpop.f32.mrf.mxu0
    %v1896 = vadd.f32 %v1589, %v1895
    %1897 = vmatmul.bf16.gmra.mxu0 %v1241
    %v1898 = vpop.f32.mrf.mxu0
    %v1899 = vadd.f32 %v1592, %v1898
    %v1900 = vpop.f32.mrf.mxu0
    %v1901 = vadd.f32 %v1594, %v1900
    %1902 = vmatmul.bf16.gmra.mxu0 %v1243
    %v1903 = vpop.f32.mrf.mxu0
    %v1904 = vadd.f32 %v1597, %v1903
    %v1905 = vpop.f32.mrf.mxu0
    %v1906 = vadd.f32 %v1599, %v1905
    %1907 = vdwg.mxu0
    %1908 = vmatpush.bf16.msra.mxu0 %v1728
    %1909 = vmatpush.bf16.msra.mxu0 %v1726
    %1910 = vmatpush.bf16.msra.mxu0 %v1724
    %1911 = vmatpush.bf16.msra.mxu0 %v1722
    %1912 = vmatpush.bf16.msra.mxu0 %v1720
    %1913 = vmatpush.bf16.msra.mxu0 %v1718
    %1914 = vmatpush.bf16.msra.mxu0 %v1716
    %1915 = vmatpush.bf16.msra.mxu0 %v1714
    %1916 = vmatmul.bf16.gmra.mxu0 %v1230
    %v1917 = vpop.f32.mrf.mxu0
    %v1918 = vadd.f32 %v1869, %v1917
    %v1919 = vpop.f32.mrf.mxu0
    %v1920 = vadd.f32 %v1871, %v1919
    %1921 = vmatmul.bf16.gmra.mxu0 %v1232
    %v1922 = vpop.f32.mrf.mxu0
    %v1923 = vadd.f32 %v1874, %v1922
    %v1924 = vpop.f32.mrf.mxu0
    %v1925 = vadd.f32 %v1876, %v1924
    %1926 = vmatmul.bf16.gmra.mxu0 %v1234
    %v1927 = vpop.f32.mrf.mxu0
    %v1928 = vadd.f32 %v1879, %v1927
    %v1929 = vpop.f32.mrf.mxu0
    %v1930 = vadd.f32 %v1881, %v1929
    %1931 = vmatmul.bf16.gmra.mxu0 %v1236
    %v1932 = vpop.f32.mrf.mxu0
    %v1933 = vadd.f32 %v1884, %v1932
    %v1934 = vpop.f32.mrf.mxu0
    %v1935 = vadd.f32 %v1886, %v1934
    %1936 = vmatmul.bf16.gmra.mxu0 %v1238
    %v1937 = vpop.f32.mrf.mxu0
    %v1938 = vadd.f32 %v1889, %v1937
    %v1939 = vpop.f32.mrf.mxu0
    %v1940 = vadd.f32 %v1891, %v1939
    %1941 = vmatmul.bf16.gmra.mxu0 %v1240
    %v1942 = vpop.f32.mrf.mxu0
    %v1943 = vadd.f32 %v1894, %v1942
    %v1944 = vpop.f32.mrf.mxu0
    %v1945 = vadd.f32 %v1896, %v1944
    %1946 = vmatmul.bf16.gmra.mxu0 %v1242
    %v1947 = vpop.f32.mrf.mxu0
    %v1948 = vadd.f32 %v1899, %v1947
    %v1949 = vpop.f32.mrf.mxu0
    %v1950 = vadd.f32 %v1901, %v1949
    %1951 = vmatmul.bf16.gmra.mxu0 %v1244
    %v1952 = vpop.f32.mrf.mxu0
    %v1953 = vadd.f32 %v1904, %v1952
    %v1954 = vpop.f32.mrf.mxu0
    %v1955 = vadd.f32 %v1906, %v1954
    %1956 = vdwg.mxu0
    %v1958 = vperm.slane %v1002, 0
    %v1959 = vperm.slane %v1002, 1
    %v1962 = vadd.f32 %v1820, %v1958
    %v1963 = vadd.f32 %v1918, %v1959
    %v1964 = vadd.f32 %v1822, %v1958
    %v1965 = vadd.f32 %v1920, %v1959
    %v1966 = vadd.f32 %v1825, %v1958
    %v1967 = vadd.f32 %v1923, %v1959
    %v1968 = vadd.f32 %v1827, %v1958
    %v1969 = vadd.f32 %v1925, %v1959
    %v1970 = vadd.f32 %v1830, %v1958
    %v1971 = vadd.f32 %v1928, %v1959
    %v1972 = vadd.f32 %v1832, %v1958
    %v1973 = vadd.f32 %v1930, %v1959
    %v1974 = vadd.f32 %v1835, %v1958
    %v1975 = vadd.f32 %v1933, %v1959
    %v1976 = vadd.f32 %v1837, %v1958
    %v1977 = vadd.f32 %v1935, %v1959
    %v1978 = vadd.f32 %v1840, %v1958
    %v1979 = vadd.f32 %v1938, %v1959
    %v1980 = vadd.f32 %v1842, %v1958
    %v1981 = vadd.f32 %v1940, %v1959
    %v1982 = vadd.f32 %v1845, %v1958
    %v1983 = vadd.f32 %v1943, %v1959
    %v1984 = vadd.f32 %v1847, %v1958
    %v1985 = vadd.f32 %v1945, %v1959
    %v1986 = vadd.f32 %v1850, %v1958
    %v1987 = vadd.f32 %v1948, %v1959
    %v1988 = vadd.f32 %v1852, %v1958
    %v1989 = vadd.f32 %v1950, %v1959
    %v1990 = vadd.f32 %v1855, %v1958
    %v1991 = vadd.f32 %v1953, %v1959
    %v1992 = vadd.f32 %v1857, %v1958
    %v1993 = vadd.f32 %v1955, %v1959
    %v1994 = vmax.f32 %v1962, 0.0
    %v1995 = vmax.f32 %v1963, 0.0
    %v1996 = vmax.f32 %v1964, 0.0
    %v1997 = vmax.f32 %v1965, 0.0
    %v1998 = vmax.f32 %v1966, 0.0
    %v1999 = vmax.f32 %v1967, 0.0
    %v2000 = vmax.f32 %v1968, 0.0
    %v2001 = vmax.f32 %v1969, 0.0
    %v2002 = vmax.f32 %v1970, 0.0
    %v2003 = vmax.f32 %v1971, 0.0
    %v2004 = vmax.f32 %v1972, 0.0
    %v2005 = vmax.f32 %v1973, 0.0
    %v2006 = vmax.f32 %v1974, 0.0
    %v2007 = vmax.f32 %v1975, 0.0
    %v2008 = vmax.f32 %v1976, 0.0
    %v2009 = vmax.f32 %v1977, 0.0
    %v2010 = vmax.f32 %v1978, 0.0
    %v2011 = vmax.f32 %v1979, 0.0
    %v2012 = vmax.f32 %v1980, 0.0
    %v2013 = vmax.f32 %v1981, 0.0
    %v2014 = vmax.f32 %v1982, 0.0
    %v2015 = vmax.f32 %v1983, 0.0
    %v2016 = vmax.f32 %v1984, 0.0
    %v2017 = vmax.f32 %v1985, 0.0
    %v2018 = vmax.f32 %v1986, 0.0
    %v2019 = vmax.f32 %v1987, 0.0
    %v2020 = vmax.f32 %v1988, 0.0
    %v2021 = vmax.f32 %v1989, 0.0
    %v2022 = vmax.f32 %v1990, 0.0
    %v2023 = vmax.f32 %v1991, 0.0
    %v2024 = vmax.f32 %v1992, 0.0
    %v2025 = vmax.f32 %v1993, 0.0
    %v2026 = vpack.c.bf16 %v1995, %v1994
    %v2027 = vpack.c.bf16 %v1997, %v1996
    %v2028 = vpack.c.bf16 %v1999, %v1998
    %v2029 = vpack.c.bf16 %v2001, %v2000
    %v2030 = vpack.c.bf16 %v2003, %v2002
    %v2031 = vpack.c.bf16 %v2005, %v2004
    %v2032 = vpack.c.bf16 %v2007, %v2006
    %v2033 = vpack.c.bf16 %v2009, %v2008
    %v2034 = vpack.c.bf16 %v2011, %v2010
    %v2035 = vpack.c.bf16 %v2013, %v2012
    %v2036 = vpack.c.bf16 %v2015, %v2014
    %v2037 = vpack.c.bf16 %v2017, %v2016
    %v2038 = vpack.c.bf16 %v2019, %v2018
    %v2039 = vpack.c.bf16 %v2021, %v2020
    %v2040 = vpack.c.bf16 %v2023, %v2022
    %v2041 = vpack.c.bf16 %v2025, %v2024
    %2042 = vst [vmem:[#allocation3] sm:$0xff] %v2026
    %2043 = vst [vmem:[#allocation3 + $0x8] sm:$0xff] %v2027
    %2044 = vst [vmem:[#allocation3 + $0x10] sm:$0xff] %v2028
    %2045 = vst [vmem:[#allocation3 + $0x18] sm:$0xff] %v2029
    %2046 = vst [vmem:[#allocation3 + $0x20] sm:$0xff] %v2030
    %2047 = vst [vmem:[#allocation3 + $0x28] sm:$0xff] %v2031
    %2048 = vst [vmem:[#allocation3 + $0x30] sm:$0xff] %v2032
    %2049 = vst [vmem:[#allocation3 + $0x38] sm:$0xff] %v2033
    %2050 = vst [vmem:[#allocation3 + $0x40] sm:$0xff] %v2034
    %2051 = vst [vmem:[#allocation3 + $0x48] sm:$0xff] %v2035
    %2052 = vst [vmem:[#allocation3 + $0x50] sm:$0xff] %v2036
    %2053 = vst [vmem:[#allocation3 + $0x58] sm:$0xff] %v2037
    %2054 = vst [vmem:[#allocation3 + $0x60] sm:$0xff] %v2038
    %2055 = vst [vmem:[#allocation3 + $0x68] sm:$0xff] %v2039
    %2056 = vst [vmem:[#allocation3 + $0x70] sm:$0xff] %v2040
    %2057 = vst [vmem:[#allocation3 + $0x78] sm:$0xff] %v2041
    %v2058 = vld [vmem:[#allocation13] sm:$0xf]
    %v2059 = vld [vmem:[#allocation13 + $0x4] sm:$0xf]
    %v2060 = vld [vmem:[#allocation13 + $0x8] sm:$0xf]
    %v2061 = vld [vmem:[#allocation13 + $0xc] sm:$0xf]
    %v2062 = vld [vmem:[#allocation13 + $0x10] sm:$0xf]
    %v2063 = vld [vmem:[#allocation13 + $0x14] sm:$0xf]
    %v2064 = vld [vmem:[#allocation13 + $0x18] sm:$0xf]
    %v2065 = vld [vmem:[#allocation13 + $0x1c] sm:$0xf]
    %v2066 = vld [vmem:[#allocation13 + $0x20] sm:$0xf]
    %v2067 = vld [vmem:[#allocation13 + $0x24] sm:$0xf]
    %v2068 = vld [vmem:[#allocation13 + $0x28] sm:$0xf]
    %v2069 = vld [vmem:[#allocation13 + $0x2c] sm:$0xf]
    %v2070 = vld [vmem:[#allocation13 + $0x30] sm:$0xf]
    %v2071 = vld [vmem:[#allocation13 + $0x34] sm:$0xf]
    %v2072 = vld [vmem:[#allocation13 + $0x38] sm:$0xf]
    %v2073 = vld [vmem:[#allocation13 + $0x3c] sm:$0xf]
    %v2074 = vld [vmem:[#allocation13 + $0x40] sm:$0xf]
    %v2075 = vld [vmem:[#allocation13 + $0x44] sm:$0xf]
    %v2076 = vld [vmem:[#allocation13 + $0x48] sm:$0xf]
    %v2077 = vld [vmem:[#allocation13 + $0x4c] sm:$0xf]
    %v2078 = vld [vmem:[#allocation13 + $0x50] sm:$0xf]
    %v2079 = vld [vmem:[#allocation13 + $0x54] sm:$0xf]
    %v2080 = vld [vmem:[#allocation13 + $0x58] sm:$0xf]
    %v2081 = vld [vmem:[#allocation13 + $0x5c] sm:$0xf]
    %v2082 = vld [vmem:[#allocation13 + $0x60] sm:$0xf]
    %v2083 = vld [vmem:[#allocation13 + $0x64] sm:$0xf]
    %v2084 = vld [vmem:[#allocation13 + $0x68] sm:$0xf]
    %v2085 = vld [vmem:[#allocation13 + $0x6c] sm:$0xf]
    %v2086 = vld [vmem:[#allocation13 + $0x70] sm:$0xf]
    %v2087 = vld [vmem:[#allocation13 + $0x74] sm:$0xf]
    %v2088 = vld [vmem:[#allocation13 + $0x78] sm:$0xf]
    %v2089 = vld [vmem:[#allocation13 + $0x7c] sm:$0xf]
    %v2090 = vld [vmem:[#allocation15] sm:$0xf]
    %v2091 = vld [vmem:[#allocation15 + $0x4] sm:$0xf]
    %v2092 = vld [vmem:[#allocation15 + $0x8] sm:$0xf]
    %v2093 = vld [vmem:[#allocation15 + $0xc] sm:$0xf]
    %v2094 = vld [vmem:[#allocation15 + $0x10] sm:$0xf]
    %v2095 = vld [vmem:[#allocation15 + $0x14] sm:$0xf]
    %v2096 = vld [vmem:[#allocation15 + $0x18] sm:$0xf]
    %v2097 = vld [vmem:[#allocation15 + $0x1c] sm:$0xf]
    %v2098 = vld [vmem:[#allocation15 + $0x20] sm:$0xf]
    %v2099 = vld [vmem:[#allocation15 + $0x24] sm:$0xf]
    %v2100 = vld [vmem:[#allocation15 + $0x28] sm:$0xf]
    %v2101 = vld [vmem:[#allocation15 + $0x2c] sm:$0xf]
    %v2102 = vld [vmem:[#allocation15 + $0x30] sm:$0xf]
    %v2103 = vld [vmem:[#allocation15 + $0x34] sm:$0xf]
    %v2104 = vld [vmem:[#allocation15 + $0x38] sm:$0xf]
    %v2105 = vld [vmem:[#allocation15 + $0x3c] sm:$0xf]
    %v2106 = vld [vmem:[#allocation15 + $0x40] sm:$0xf]
    %v2107 = vld [vmem:[#allocation15 + $0x44] sm:$0xf]
    %v2108 = vld [vmem:[#allocation15 + $0x48] sm:$0xf]
    %v2109 = vld [vmem:[#allocation15 + $0x4c] sm:$0xf]
    %v2110 = vld [vmem:[#allocation15 + $0x50] sm:$0xf]
    %v2111 = vld [vmem:[#allocation15 + $0x54] sm:$0xf]
    %v2112 = vld [vmem:[#allocation15 + $0x58] sm:$0xf]
    %v2113 = vld [vmem:[#allocation15 + $0x5c] sm:$0xf]
    %v2114 = vld [vmem:[#allocation15 + $0x60] sm:$0xf]
    %v2115 = vld [vmem:[#allocation15 + $0x64] sm:$0xf]
    %v2116 = vld [vmem:[#allocation15 + $0x68] sm:$0xf]
    %v2117 = vld [vmem:[#allocation15 + $0x6c] sm:$0xf]
    %v2118 = vld [vmem:[#allocation15 + $0x70] sm:$0xf]
    %v2119 = vld [vmem:[#allocation15 + $0x74] sm:$0xf]
    %v2120 = vld [vmem:[#allocation15 + $0x78] sm:$0xf]
    %v2121 = vld [vmem:[#allocation15 + $0x7c] sm:$0xf]
    %v2122 = vld [vmem:[%s11] sm:$0x1]
    %v2123 = vld [vmem:[#allocation3] sm:$0xff]
    %v2124 = vld [vmem:[#allocation3 + $0x8] sm:$0xff]
    %v2125 = vld [vmem:[#allocation3 + $0x10] sm:$0xff]
    %v2126 = vld [vmem:[#allocation3 + $0x18] sm:$0xff]
    %v2127 = vld [vmem:[#allocation3 + $0x20] sm:$0xff]
    %v2128 = vld [vmem:[#allocation3 + $0x28] sm:$0xff]
    %v2129 = vld [vmem:[#allocation3 + $0x30] sm:$0xff]
    %v2130 = vld [vmem:[#allocation3 + $0x38] sm:$0xff]
    %v2131 = vld [vmem:[#allocation3 + $0x40] sm:$0xff]
    %v2132 = vld [vmem:[#allocation3 + $0x48] sm:$0xff]
    %v2133 = vld [vmem:[#allocation3 + $0x50] sm:$0xff]
    %v2134 = vld [vmem:[#allocation3 + $0x58] sm:$0xff]
    %v2135 = vld [vmem:[#allocation3 + $0x60] sm:$0xff]
    %v2136 = vld [vmem:[#allocation3 + $0x68] sm:$0xff]
    %v2137 = vld [vmem:[#allocation3 + $0x70] sm:$0xff]
    %v2138 = vld [vmem:[#allocation3 + $0x78] sm:$0xff]
    %v2155 = vunpack.c.l.b16 %v2123
    %v2156 = vunpack.c.h.b16 %v2123
    %v2157 = vunpack.c.l.b16 %v2124
    %v2158 = vunpack.c.h.b16 %v2124
    %v2159 = vunpack.c.l.b16 %v2125
    %v2160 = vunpack.c.h.b16 %v2125
    %v2161 = vunpack.c.l.b16 %v2126
    %v2162 = vunpack.c.h.b16 %v2126
    %v2163 = vunpack.c.l.b16 %v2127
    %v2164 = vunpack.c.h.b16 %v2127
    %v2165 = vunpack.c.l.b16 %v2128
    %v2166 = vunpack.c.h.b16 %v2128
    %v2167 = vunpack.c.l.b16 %v2129
    %v2168 = vunpack.c.h.b16 %v2129
    %v2169 = vunpack.c.l.b16 %v2130
    %v2170 = vunpack.c.h.b16 %v2130
    %v2171 = vunpack.c.l.b16 %v2131
    %v2172 = vunpack.c.h.b16 %v2131
    %v2173 = vunpack.c.l.b16 %v2132
    %v2174 = vunpack.c.h.b16 %v2132
    %v2175 = vunpack.c.l.b16 %v2133
    %v2176 = vunpack.c.h.b16 %v2133
    %v2177 = vunpack.c.l.b16 %v2134
    %v2178 = vunpack.c.h.b16 %v2134
    %v2179 = vunpack.c.l.b16 %v2135
    %v2180 = vunpack.c.h.b16 %v2135
    %v2181 = vunpack.c.l.b16 %v2136
    %v2182 = vunpack.c.h.b16 %v2136
    %v2183 = vunpack.c.l.b16 %v2137
    %v2184 = vunpack.c.h.b16 %v2137
    %v2185 = vunpack.c.l.b16 %v2138
    %v2186 = vunpack.c.h.b16 %v2138
    %v2187 = vpack.c.b16 %v2157, %v2155
    %v2188 = vpack.c.b16 %v2158, %v2156
    %v2189 = vpack.c.b16 %v2161, %v2159
    %v2190 = vpack.c.b16 %v2162, %v2160
    %v2191 = vpack.c.b16 %v2165, %v2163
    %v2192 = vpack.c.b16 %v2166, %v2164
    %v2193 = vpack.c.b16 %v2169, %v2167
    %v2194 = vpack.c.b16 %v2170, %v2168
    %v2195 = vpack.c.b16 %v2173, %v2171
    %v2196 = vpack.c.b16 %v2174, %v2172
    %v2197 = vpack.c.b16 %v2177, %v2175
    %v2198 = vpack.c.b16 %v2178, %v2176
    %v2199 = vpack.c.b16 %v2181, %v2179
    %v2200 = vpack.c.b16 %v2182, %v2180
    %v2201 = vpack.c.b16 %v2185, %v2183
    %v2202 = vpack.c.b16 %v2186, %v2184
    %v2251 = vunpack.c.l.b16 %v2058
    %v2252 = vunpack.c.l.b16 %v2059
    %v2253 = vunpack.c.l.b16 %v2060
    %v2254 = vunpack.c.l.b16 %v2061
    %v2255 = vunpack.c.l.b16 %v2062
    %v2256 = vunpack.c.l.b16 %v2063
    %v2257 = vunpack.c.l.b16 %v2064
    %v2258 = vunpack.c.l.b16 %v2065
    %v2259 = vunpack.c.l.b16 %v2066
    %v2260 = vunpack.c.l.b16 %v2067
    %v2261 = vunpack.c.l.b16 %v2068
    %v2262 = vunpack.c.l.b16 %v2069
    %v2263 = vunpack.c.l.b16 %v2070
    %v2264 = vunpack.c.l.b16 %v2071
    %v2265 = vunpack.c.l.b16 %v2072
    %v2266 = vunpack.c.l.b16 %v2073
    %v2267 = vunpack.c.l.b16 %v2074
    %v2268 = vunpack.c.l.b16 %v2075
    %v2269 = vunpack.c.l.b16 %v2076
    %v2270 = vunpack.c.l.b16 %v2077
    %v2271 = vunpack.c.l.b16 %v2078
    %v2272 = vunpack.c.l.b16 %v2079
    %v2273 = vunpack.c.l.b16 %v2080
    %v2274 = vunpack.c.l.b16 %v2081
    %v2275 = vunpack.c.l.b16 %v2082
    %v2276 = vunpack.c.l.b16 %v2083
    %v2277 = vunpack.c.l.b16 %v2084
    %v2278 = vunpack.c.l.b16 %v2085
    %v2279 = vunpack.c.l.b16 %v2086
    %v2280 = vunpack.c.l.b16 %v2087
    %v2281 = vunpack.c.l.b16 %v2088
    %v2282 = vunpack.c.l.b16 %v2089
    %v2283 = vpack.c.b16 %v2252, %v2251
    %v2284 = vpack.c.b16 %v2254, %v2253
    %v2285 = vpack.c.b16 %v2256, %v2255
    %v2286 = vpack.c.b16 %v2258, %v2257
    %v2287 = vpack.c.b16 %v2260, %v2259
    %v2288 = vpack.c.b16 %v2262, %v2261
    %v2289 = vpack.c.b16 %v2264, %v2263
    %v2290 = vpack.c.b16 %v2266, %v2265
    %v2291 = vpack.c.b16 %v2268, %v2267
    %v2292 = vpack.c.b16 %v2270, %v2269
    %v2293 = vpack.c.b16 %v2272, %v2271
    %v2294 = vpack.c.b16 %v2274, %v2273
    %v2295 = vpack.c.b16 %v2276, %v2275
    %v2296 = vpack.c.b16 %v2278, %v2277
    %v2297 = vpack.c.b16 %v2280, %v2279
    %v2298 = vpack.c.b16 %v2282, %v2281
    %2315 = vmatpush.bf16.msra.mxu0 %v2290
    %2316 = vmatpush.bf16.msra.mxu0 %v2289
    %2317 = vmatpush.bf16.msra.mxu0 %v2288
    %2318 = vmatpush.bf16.msra.mxu0 %v2287
    %2319 = vmatpush.bf16.msra.mxu0 %v2286
    %2320 = vmatpush.bf16.msra.mxu0 %v2285
    %2321 = vmatpush.bf16.msra.mxu0 %v2284
    %2322 = vmatpush.bf16.msra.mxu0 %v2283
    %2323 = vmatmul.bf16.gmra.mxu0 %v2187
    %v2324 = vpop.f32.mrf.mxu0
    %v2325 = vadd.f32 0.0, %v2324
    %v2326 = vpop.f32.mrf.mxu0
    %v2327 = vadd.f32 0.0, %v2326
    %2328 = vmatmul.bf16.gmra.mxu0 %v2189
    %v2329 = vpop.f32.mrf.mxu0
    %v2330 = vadd.f32 0.0, %v2329
    %v2331 = vpop.f32.mrf.mxu0
    %v2332 = vadd.f32 0.0, %v2331
    %2333 = vmatmul.bf16.gmra.mxu0 %v2191
    %v2334 = vpop.f32.mrf.mxu0
    %v2335 = vadd.f32 0.0, %v2334
    %v2336 = vpop.f32.mrf.mxu0
    %v2337 = vadd.f32 0.0, %v2336
    %2338 = vmatmul.bf16.gmra.mxu0 %v2193
    %v2339 = vpop.f32.mrf.mxu0
    %v2340 = vadd.f32 0.0, %v2339
    %v2341 = vpop.f32.mrf.mxu0
    %v2342 = vadd.f32 0.0, %v2341
    %2343 = vmatmul.bf16.gmra.mxu0 %v2195
    %v2344 = vpop.f32.mrf.mxu0
    %v2345 = vadd.f32 0.0, %v2344
    %v2346 = vpop.f32.mrf.mxu0
    %v2347 = vadd.f32 0.0, %v2346
    %2348 = vmatmul.bf16.gmra.mxu0 %v2197
    %v2349 = vpop.f32.mrf.mxu0
    %v2350 = vadd.f32 0.0, %v2349
    %v2351 = vpop.f32.mrf.mxu0
    %v2352 = vadd.f32 0.0, %v2351
    %2353 = vmatmul.bf16.gmra.mxu0 %v2199
    %v2354 = vpop.f32.mrf.mxu0
    %v2355 = vadd.f32 0.0, %v2354
    %v2356 = vpop.f32.mrf.mxu0
    %v2357 = vadd.f32 0.0, %v2356
    %2358 = vmatmul.bf16.gmra.mxu0 %v2201
    %v2359 = vpop.f32.mrf.mxu0
    %v2360 = vadd.f32 0.0, %v2359
    %v2361 = vpop.f32.mrf.mxu0
    %v2362 = vadd.f32 0.0, %v2361
    %2363 = vdwg.mxu0
    %2364 = vmatpush.bf16.msra.mxu0 %v2298
    %2365 = vmatpush.bf16.msra.mxu0 %v2297
    %2366 = vmatpush.bf16.msra.mxu0 %v2296
    %2367 = vmatpush.bf16.msra.mxu0 %v2295
    %2368 = vmatpush.bf16.msra.mxu0 %v2294
    %2369 = vmatpush.bf16.msra.mxu0 %v2293
    %2370 = vmatpush.bf16.msra.mxu0 %v2292
    %2371 = vmatpush.bf16.msra.mxu0 %v2291
    %2372 = vmatmul.bf16.gmra.mxu0 %v2188
    %v2373 = vpop.f32.mrf.mxu0
    %v2374 = vadd.f32 %v2325, %v2373
    %v2375 = vpop.f32.mrf.mxu0
    %v2376 = vadd.f32 %v2327, %v2375
    %2377 = vmatmul.bf16.gmra.mxu0 %v2190
    %v2378 = vpop.f32.mrf.mxu0
    %v2379 = vadd.f32 %v2330, %v2378
    %v2380 = vpop.f32.mrf.mxu0
    %v2381 = vadd.f32 %v2332, %v2380
    %2382 = vmatmul.bf16.gmra.mxu0 %v2192
    %v2383 = vpop.f32.mrf.mxu0
    %v2384 = vadd.f32 %v2335, %v2383
    %v2385 = vpop.f32.mrf.mxu0
    %v2386 = vadd.f32 %v2337, %v2385
    %2387 = vmatmul.bf16.gmra.mxu0 %v2194
    %v2388 = vpop.f32.mrf.mxu0
    %v2389 = vadd.f32 %v2340, %v2388
    %v2390 = vpop.f32.mrf.mxu0
    %v2391 = vadd.f32 %v2342, %v2390
    %2392 = vmatmul.bf16.gmra.mxu0 %v2196
    %v2393 = vpop.f32.mrf.mxu0
    %v2394 = vadd.f32 %v2345, %v2393
    %v2395 = vpop.f32.mrf.mxu0
    %v2396 = vadd.f32 %v2347, %v2395
    %2397 = vmatmul.bf16.gmra.mxu0 %v2198
    %v2398 = vpop.f32.mrf.mxu0
    %v2399 = vadd.f32 %v2350, %v2398
    %v2400 = vpop.f32.mrf.mxu0
    %v2401 = vadd.f32 %v2352, %v2400
    %2402 = vmatmul.bf16.gmra.mxu0 %v2200
    %v2403 = vpop.f32.mrf.mxu0
    %v2404 = vadd.f32 %v2355, %v2403
    %v2405 = vpop.f32.mrf.mxu0
    %v2406 = vadd.f32 %v2357, %v2405
    %2407 = vmatmul.bf16.gmra.mxu0 %v2202
    %v2408 = vpop.f32.mrf.mxu0
    %v2409 = vadd.f32 %v2360, %v2408
    %v2410 = vpop.f32.mrf.mxu0
    %v2411 = vadd.f32 %v2362, %v2410
    %2412 = vdwg.mxu0
    %v2413 = vpack.c.bf16 %v2376, %v2374
    %v2414 = vpack.c.bf16 %v2381, %v2379
    %v2415 = vpack.c.bf16 %v2386, %v2384
    %v2416 = vpack.c.bf16 %v2391, %v2389
    %v2417 = vpack.c.bf16 %v2396, %v2394
    %v2418 = vpack.c.bf16 %v2401, %v2399
    %v2419 = vpack.c.bf16 %v2406, %v2404
    %v2420 = vpack.c.bf16 %v2411, %v2409
    %2421 = vmatpush.bf16.msra.mxu0 %v2420
    %2422 = vmatpush.bf16.msra.mxu0 %v2419
    %2423 = vmatpush.bf16.msra.mxu0 %v2418
    %2424 = vmatpush.bf16.msra.mxu0 %v2417
    %2425 = vmatpush.bf16.msra.mxu0 %v2416
    %2426 = vmatpush.bf16.msra.mxu0 %v2415
    %2427 = vmatpush.bf16.msra.mxu0 %v2414
    %2428 = vmatpush.bf16.msra.mxu0 %v2413
    %2429 = vmatmul.bf16.gmra.mxu0 %v264
    %v2430 = vpop.f32.mrf.mxu0
    %v2431 = vadd.f32 0.0, %v2430
    %v2432 = vpop.f32.mrf.mxu0
    %v2433 = vadd.f32 0.0, %v2432
    %2434 = vmatmul.bf16.gmra.mxu0 %v265
    %v2435 = vpop.f32.mrf.mxu0
    %v2436 = vadd.f32 0.0, %v2435
    %v2437 = vpop.f32.mrf.mxu0
    %v2438 = vadd.f32 0.0, %v2437
    %2439 = vmatmul.bf16.gmra.mxu0 %v266
    %v2440 = vpop.f32.mrf.mxu0
    %v2441 = vadd.f32 0.0, %v2440
    %v2442 = vpop.f32.mrf.mxu0
    %v2443 = vadd.f32 0.0, %v2442
    %2444 = vmatmul.bf16.gmra.mxu0 %v267
    %v2445 = vpop.f32.mrf.mxu0
    %v2446 = vadd.f32 0.0, %v2445
    %v2447 = vpop.f32.mrf.mxu0
    %v2448 = vadd.f32 0.0, %v2447
    %2449 = vmatmul.bf16.gmra.mxu0 %v268
    %v2450 = vpop.f32.mrf.mxu0
    %v2451 = vadd.f32 0.0, %v2450
    %v2452 = vpop.f32.mrf.mxu0
    %v2453 = vadd.f32 0.0, %v2452
    %2454 = vmatmul.bf16.gmra.mxu0 %v269
    %v2455 = vpop.f32.mrf.mxu0
    %v2456 = vadd.f32 0.0, %v2455
    %v2457 = vpop.f32.mrf.mxu0
    %v2458 = vadd.f32 0.0, %v2457
    %2459 = vmatmul.bf16.gmra.mxu0 %v270
    %v2460 = vpop.f32.mrf.mxu0
    %v2461 = vadd.f32 0.0, %v2460
    %v2462 = vpop.f32.mrf.mxu0
    %v2463 = vadd.f32 0.0, %v2462
    %2464 = vmatmul.bf16.gmra.mxu0 %v271
    %v2465 = vpop.f32.mrf.mxu0
    %v2466 = vadd.f32 0.0, %v2465
    %v2467 = vpop.f32.mrf.mxu0
    %v2468 = vadd.f32 0.0, %v2467
    %2469 = vdwg.mxu0
    %v2470 = vmul.f32 %v380, %v2431
    %v2471 = vmul.f32 %v385, %v2433
    %v2472 = vmul.f32 %v390, %v2436
    %v2473 = vmul.f32 %v395, %v2438
    %v2474 = vmul.f32 %v400, %v2441
    %v2475 = vmul.f32 %v405, %v2443
    %v2476 = vmul.f32 %v410, %v2446
    %v2477 = vmul.f32 %v415, %v2448
    %v2478 = vmul.f32 %v420, %v2451
    %v2479 = vmul.f32 %v425, %v2453
    %v2480 = vmul.f32 %v430, %v2456
    %v2481 = vmul.f32 %v435, %v2458
    %v2482 = vmul.f32 %v440, %v2461
    %v2483 = vmul.f32 %v445, %v2463
    %v2484 = vmul.f32 %v450, %v2466
    %v2485 = vmul.f32 %v455, %v2468
    %v2518 = vunpack.c.l.b16 %v2090
    %v2519 = vunpack.c.l.b16 %v2091
    %v2520 = vunpack.c.l.b16 %v2092
    %v2521 = vunpack.c.l.b16 %v2093
    %v2522 = vunpack.c.l.b16 %v2094
    %v2523 = vunpack.c.l.b16 %v2095
    %v2524 = vunpack.c.l.b16 %v2096
    %v2525 = vunpack.c.l.b16 %v2097
    %v2526 = vunpack.c.l.b16 %v2098
    %v2527 = vunpack.c.l.b16 %v2099
    %v2528 = vunpack.c.l.b16 %v2100
    %v2529 = vunpack.c.l.b16 %v2101
    %v2530 = vunpack.c.l.b16 %v2102
    %v2531 = vunpack.c.l.b16 %v2103
    %v2532 = vunpack.c.l.b16 %v2104
    %v2533 = vunpack.c.l.b16 %v2105
    %v2534 = vunpack.c.l.b16 %v2106
    %v2535 = vunpack.c.l.b16 %v2107
    %v2536 = vunpack.c.l.b16 %v2108
    %v2537 = vunpack.c.l.b16 %v2109
    %v2538 = vunpack.c.l.b16 %v2110
    %v2539 = vunpack.c.l.b16 %v2111
    %v2540 = vunpack.c.l.b16 %v2112
    %v2541 = vunpack.c.l.b16 %v2113
    %v2542 = vunpack.c.l.b16 %v2114
    %v2543 = vunpack.c.l.b16 %v2115
    %v2544 = vunpack.c.l.b16 %v2116
    %v2545 = vunpack.c.l.b16 %v2117
    %v2546 = vunpack.c.l.b16 %v2118
    %v2547 = vunpack.c.l.b16 %v2119
    %v2548 = vunpack.c.l.b16 %v2120
    %v2549 = vunpack.c.l.b16 %v2121
    %v2550 = vpack.c.b16 %v2519, %v2518
    %v2551 = vpack.c.b16 %v2521, %v2520
    %v2552 = vpack.c.b16 %v2523, %v2522
    %v2553 = vpack.c.b16 %v2525, %v2524
    %v2554 = vpack.c.b16 %v2527, %v2526
    %v2555 = vpack.c.b16 %v2529, %v2528
    %v2556 = vpack.c.b16 %v2531, %v2530
    %v2557 = vpack.c.b16 %v2533, %v2532
    %v2558 = vpack.c.b16 %v2535, %v2534
    %v2559 = vpack.c.b16 %v2537, %v2536
    %v2560 = vpack.c.b16 %v2539, %v2538
    %v2561 = vpack.c.b16 %v2541, %v2540
    %v2562 = vpack.c.b16 %v2543, %v2542
    %v2563 = vpack.c.b16 %v2545, %v2544
    %v2564 = vpack.c.b16 %v2547, %v2546
    %v2565 = vpack.c.b16 %v2549, %v2548
    %2582 = vmatpush.bf16.msra.mxu0 %v2557
    %2583 = vmatpush.bf16.msra.mxu0 %v2556
    %2584 = vmatpush.bf16.msra.mxu0 %v2555
    %2585 = vmatpush.bf16.msra.mxu0 %v2554
    %2586 = vmatpush.bf16.msra.mxu0 %v2553
    %2587 = vmatpush.bf16.msra.mxu0 %v2552
    %2588 = vmatpush.bf16.msra.mxu0 %v2551
    %2589 = vmatpush.bf16.msra.mxu0 %v2550
    %2590 = vmatmul.bf16.gmra.mxu0 %v2187
    %v2591 = vpop.f32.mrf.mxu0
    %v2592 = vadd.f32 0.0, %v2591
    %v2593 = vpop.f32.mrf.mxu0
    %v2594 = vadd.f32 0.0, %v2593
    %2595 = vmatmul.bf16.gmra.mxu0 %v2189
    %v2596 = vpop.f32.mrf.mxu0
    %v2597 = vadd.f32 0.0, %v2596
    %v2598 = vpop.f32.mrf.mxu0
    %v2599 = vadd.f32 0.0, %v2598
    %2600 = vmatmul.bf16.gmra.mxu0 %v2191
    %v2601 = vpop.f32.mrf.mxu0
    %v2602 = vadd.f32 0.0, %v2601
    %v2603 = vpop.f32.mrf.mxu0
    %v2604 = vadd.f32 0.0, %v2603
    %2605 = vmatmul.bf16.gmra.mxu0 %v2193
    %v2606 = vpop.f32.mrf.mxu0
    %v2607 = vadd.f32 0.0, %v2606
    %v2608 = vpop.f32.mrf.mxu0
    %v2609 = vadd.f32 0.0, %v2608
    %2610 = vmatmul.bf16.gmra.mxu0 %v2195
    %v2611 = vpop.f32.mrf.mxu0
    %v2612 = vadd.f32 0.0, %v2611
    %v2613 = vpop.f32.mrf.mxu0
    %v2614 = vadd.f32 0.0, %v2613
    %2615 = vmatmul.bf16.gmra.mxu0 %v2197
    %v2616 = vpop.f32.mrf.mxu0
    %v2617 = vadd.f32 0.0, %v2616
    %v2618 = vpop.f32.mrf.mxu0
    %v2619 = vadd.f32 0.0, %v2618
    %2620 = vmatmul.bf16.gmra.mxu0 %v2199
    %v2621 = vpop.f32.mrf.mxu0
    %v2622 = vadd.f32 0.0, %v2621
    %v2623 = vpop.f32.mrf.mxu0
    %v2624 = vadd.f32 0.0, %v2623
    %2625 = vmatmul.bf16.gmra.mxu0 %v2201
    %v2626 = vpop.f32.mrf.mxu0
    %v2627 = vadd.f32 0.0, %v2626
    %v2628 = vpop.f32.mrf.mxu0
    %v2629 = vadd.f32 0.0, %v2628
    %2630 = vdwg.mxu0
    %2631 = vmatpush.bf16.msra.mxu0 %v2565
    %2632 = vmatpush.bf16.msra.mxu0 %v2564
    %2633 = vmatpush.bf16.msra.mxu0 %v2563
    %2634 = vmatpush.bf16.msra.mxu0 %v2562
    %2635 = vmatpush.bf16.msra.mxu0 %v2561
    %2636 = vmatpush.bf16.msra.mxu0 %v2560
    %2637 = vmatpush.bf16.msra.mxu0 %v2559
    %2638 = vmatpush.bf16.msra.mxu0 %v2558
    %2639 = vmatmul.bf16.gmra.mxu0 %v2188
    %v2640 = vpop.f32.mrf.mxu0
    %v2641 = vadd.f32 %v2592, %v2640
    %v2642 = vpop.f32.mrf.mxu0
    %v2643 = vadd.f32 %v2594, %v2642
    %2644 = vmatmul.bf16.gmra.mxu0 %v2190
    %v2645 = vpop.f32.mrf.mxu0
    %v2646 = vadd.f32 %v2597, %v2645
    %v2647 = vpop.f32.mrf.mxu0
    %v2648 = vadd.f32 %v2599, %v2647
    %2649 = vmatmul.bf16.gmra.mxu0 %v2192
    %v2650 = vpop.f32.mrf.mxu0
    %v2651 = vadd.f32 %v2602, %v2650
    %v2652 = vpop.f32.mrf.mxu0
    %v2653 = vadd.f32 %v2604, %v2652
    %2654 = vmatmul.bf16.gmra.mxu0 %v2194
    %v2655 = vpop.f32.mrf.mxu0
    %v2656 = vadd.f32 %v2607, %v2655
    %v2657 = vpop.f32.mrf.mxu0
    %v2658 = vadd.f32 %v2609, %v2657
    %2659 = vmatmul.bf16.gmra.mxu0 %v2196
    %v2660 = vpop.f32.mrf.mxu0
    %v2661 = vadd.f32 %v2612, %v2660
    %v2662 = vpop.f32.mrf.mxu0
    %v2663 = vadd.f32 %v2614, %v2662
    %2664 = vmatmul.bf16.gmra.mxu0 %v2198
    %v2665 = vpop.f32.mrf.mxu0
    %v2666 = vadd.f32 %v2617, %v2665
    %v2667 = vpop.f32.mrf.mxu0
    %v2668 = vadd.f32 %v2619, %v2667
    %2669 = vmatmul.bf16.gmra.mxu0 %v2200
    %v2670 = vpop.f32.mrf.mxu0
    %v2671 = vadd.f32 %v2622, %v2670
    %v2672 = vpop.f32.mrf.mxu0
    %v2673 = vadd.f32 %v2624, %v2672
    %2674 = vmatmul.bf16.gmra.mxu0 %v2202
    %v2675 = vpop.f32.mrf.mxu0
    %v2676 = vadd.f32 %v2627, %v2675
    %v2677 = vpop.f32.mrf.mxu0
    %v2678 = vadd.f32 %v2629, %v2677
    %2679 = vdwg.mxu0
    %v2680 = vadd.f32 %v2470, %v2641
    %v2681 = vadd.f32 %v2471, %v2643
    %v2682 = vadd.f32 %v2472, %v2646
    %v2683 = vadd.f32 %v2473, %v2648
    %v2684 = vadd.f32 %v2474, %v2651
    %v2685 = vadd.f32 %v2475, %v2653
    %v2686 = vadd.f32 %v2476, %v2656
    %v2687 = vadd.f32 %v2477, %v2658
    %v2688 = vadd.f32 %v2478, %v2661
    %v2689 = vadd.f32 %v2479, %v2663
    %v2690 = vadd.f32 %v2480, %v2666
    %v2691 = vadd.f32 %v2481, %v2668
    %v2692 = vadd.f32 %v2482, %v2671
    %v2693 = vadd.f32 %v2483, %v2673
    %v2694 = vadd.f32 %v2484, %v2676
    %v2695 = vadd.f32 %v2485, %v2678
    %v2697 = vperm.slane %v2122, 0
    %v2699 = vadd.f32 %v2680, %v2697
    %v2700 = vadd.f32 %v2681, %v2697
    %v2701 = vadd.f32 %v2682, %v2697
    %v2702 = vadd.f32 %v2683, %v2697
    %v2703 = vadd.f32 %v2684, %v2697
    %v2704 = vadd.f32 %v2685, %v2697
    %v2705 = vadd.f32 %v2686, %v2697
    %v2706 = vadd.f32 %v2687, %v2697
    %v2707 = vadd.f32 %v2688, %v2697
    %v2708 = vadd.f32 %v2689, %v2697
    %v2709 = vadd.f32 %v2690, %v2697
    %v2710 = vadd.f32 %v2691, %v2697
    %v2711 = vadd.f32 %v2692, %v2697
    %v2712 = vadd.f32 %v2693, %v2697
    %v2713 = vadd.f32 %v2694, %v2697
    %v2714 = vadd.f32 %v2695, %v2697
    %2715 = vst [vmem:[#allocation16] sm:$0xff] %v2699
    %2716 = vst [vmem:[#allocation16 + $0x8] sm:$0xff] %v2700
    %2717 = vst [vmem:[#allocation16 + $0x10] sm:$0xff] %v2701
    %2718 = vst [vmem:[#allocation16 + $0x18] sm:$0xff] %v2702
    %2719 = vst [vmem:[#allocation16 + $0x20] sm:$0xff] %v2703
    %2720 = vst [vmem:[#allocation16 + $0x28] sm:$0xff] %v2704
    %2721 = vst [vmem:[#allocation16 + $0x30] sm:$0xff] %v2705
    %2722 = vst [vmem:[#allocation16 + $0x38] sm:$0xff] %v2706
    %2723 = vst [vmem:[#allocation16 + $0x40] sm:$0xff] %v2707
    %2724 = vst [vmem:[#allocation16 + $0x48] sm:$0xff] %v2708
    %2725 = vst [vmem:[#allocation16 + $0x50] sm:$0xff] %v2709
    %2726 = vst [vmem:[#allocation16 + $0x58] sm:$0xff] %v2710
    %2727 = vst [vmem:[#allocation16 + $0x60] sm:$0xff] %v2711
    %2728 = vst [vmem:[#allocation16 + $0x68] sm:$0xff] %v2712
    %2729 = vst [vmem:[#allocation16 + $0x70] sm:$0xff] %v2713
    %2730 = vst [vmem:[#allocation16 + $0x78] sm:$0xff] %v2714
    // Predicated region
    $region78: #{tpu_custom_call.1} parent=1 // pred_check
      _
    $region79: #{tpu_custom_call.1} parent=1 // pred_check_branch
      %2732 = sbr.rel (0) target = $region81
    $region80: #{tpu_custom_call.1} parent=1 // pred_region
      %2734 = vsyncadd [#allocation6], 0
      %s2735 = sshll.u32 [#allocation16], 4
      %s2736 = int_to_ptr.vmem [resolvable:$true] %s2735
      %s2737 = sshll.u32 %s12, 4
      %s2738 = int_to_ptr.hbm [resolvable:$true] %s2737
      %2743 = dma.vmem_to_hbm [thread:$0]  %s2736, 2048, %s2738, [#allocation6], 128, 128, 8
    $region81: #{tpu_custom_call.1} parent=1 // pred_fallthru
      _
    // Predicated region
    $region82: #{tpu_custom_call.1} parent=1 // pred_check
      _
    $region83: #{tpu_custom_call.1} parent=1 // pred_check_branch
      %2745 = sbr.rel (0) target = $region85
    $region84: #{tpu_custom_call.1} parent=1 // pred_region
      %2747 = dma.done [#allocation6], 2048
    $region85: #{tpu_custom_call.1} parent=1 // pred_fallthru
      _
    %2748 = vsyncpa [#allocation5], 1
    %2749 = vsyncpa [#allocation8], 1
    %2750 = vsyncpa [#allocation11], 1
    %2751 = vsyncpa [#allocation14], 1
    %2752 = vsyncpa [#allocation6], 1

</llo_original>
